<compile_context>
chip_gen: v7x
topology: tpu7x:2x2x1
jax: 0.10.0
libtpu: 0.0.40
codegen_flags: <defaults>
</compile_context>

<pallas_src>
import jax
import jax.numpy as jnp
from jax.experimental import pallas as pl
from jax.experimental.pallas import tpu as pltpu

# ---- synthetic "bert-base-uncased"-like config, shrunk for the example ----
VOCAB = 100
HIDDEN = 32
N_HEADS = 2
HEAD_DIM = HIDDEN // N_HEADS
N_LAYERS = 2
INTERMEDIATE = 64
MAX_POS = 16
TYPE_VOCAB = 2
NUM_LABELS = 2            # dataset != 'ag'  ->  num_labels = 2
LN_EPS = 1e-12            # BERT LayerNorm eps
ATT_SCALE = 1.0 / (float(HEAD_DIM) ** 0.5)


# --------------------------- in-kernel helpers -------------------------------

def _bf16_matmul(x, w):
    """MXU matmul with bf16 operands and f32 accumulation."""
    return jnp.dot(x.astype(jnp.bfloat16), w.astype(jnp.bfloat16),
                   preferred_element_type=jnp.float32)


def _layernorm(x, gamma, beta):
    mean = jnp.mean(x, axis=-1, keepdims=True)
    cent = x - mean
    var = jnp.mean(cent * cent, axis=-1, keepdims=True)
    inv = jax.lax.rsqrt(var + LN_EPS)
    return cent * inv * gamma + beta


def _gelu(x):
    # TODO(synk): HF BERT "gelu" is erf-based; tanh approximation used for robust TPU lowering.
    return 0.5 * x * (1.0 + jnp.tanh(0.7978845608028654 * (x + 0.044715 * x * x * x)))


# --------------------------- Pallas kernels ----------------------------------

def _embed_ln_kernel(we_ref, pe_ref, te_ref, g_ref, b_ref, o_ref):
    """Fused (word + position + type) embedding sum + LayerNorm, one batch element."""
    x = (we_ref[0] + pe_ref[0] + te_ref[0]).astype(jnp.float32)          # [S, H]
    o_ref[0] = _layernorm(x, g_ref[...], b_ref[...]).astype(o_ref.dtype)


def embed_layernorm(word_e, pos_e, type_e, gamma, beta):
    B, S, H = word_e.shape
    return pl.pallas_call(
        _embed_ln_kernel,
        out_shape=jax.ShapeDtypeStruct((B, S, H), jnp.float32),
        grid=(B,),
        in_specs=[
            pl.BlockSpec((1, S, H), lambda b: (b, 0, 0)),
            pl.BlockSpec((1, S, H), lambda b: (0, 0, 0)),
            pl.BlockSpec((1, S, H), lambda b: (b, 0, 0)),
            pl.BlockSpec((1, H), lambda b: (0, 0)),
            pl.BlockSpec((1, H), lambda b: (0, 0)),
        ],
        out_specs=pl.BlockSpec((1, S, H), lambda b: (b, 0, 0)),
        compiler_params=pltpu.CompilerParams(dimension_semantics=("parallel",)),
    )(word_e, pos_e, type_e, gamma.reshape(1, H), beta.reshape(1, H))


def _encoder_layer_kernel(h_ref, m_ref,
                          qkv_w_ref, qkv_b_ref,
                          ao_w_ref, ao_b_ref,
                          ln1_g_ref, ln1_b_ref,
                          i_w_ref, i_b_ref,
                          o_w_ref, o_b_ref,
                          ln2_g_ref, ln2_b_ref,
                          out_ref):
    """One fused BERT encoder layer for one batch element (all heads in-register)."""
    x = h_ref[0].astype(jnp.float32)                                     # [S, H]
    mask = m_ref[0]                                                      # [1, S] additive mask

    # Fused QKV projection: single MXU matmul against the [H, 3H] weight.
    qkv = _bf16_matmul(x, qkv_w_ref[...]) + qkv_b_ref[...]               # [S, 3H]

    # Multi-head self-attention; heads unrolled (static lane slices, no reshapes/transposes
    # of the lane dimension beyond k.T).
    ctx_heads = []
    for h in range(N_HEADS):
        lo = h * HEAD_DIM
        q_h = qkv[:, lo:lo + HEAD_DIM]                                   # [S, Dh]
        k_h = qkv[:, HIDDEN + lo:HIDDEN + lo + HEAD_DIM]                 # [S, Dh]
        v_h = qkv[:, 2 * HIDDEN + lo:2 * HIDDEN + lo + HEAD_DIM]         # [S, Dh]
        s = _bf16_matmul(q_h, k_h.T) * ATT_SCALE + mask                  # [S, S], mask bcast
        s = s - jnp.max(s, axis=-1, keepdims=True)
        p = jnp.exp(s)
        p = p * pl.reciprocal(jnp.sum(p, axis=-1, keepdims=True), approx=True)
        ctx_heads.append(_bf16_matmul(p, v_h))                           # [S, Dh]
    ctx = jnp.concatenate(ctx_heads, axis=-1)                            # [S, H]

    # Attention output projection + residual + LayerNorm.
    attn_out = _bf16_matmul(ctx, ao_w_ref[...]) + ao_b_ref[...]
    h1 = _layernorm(attn_out + x, ln1_g_ref[...], ln1_b_ref[...])

    # Feed-forward (GELU) + residual + LayerNorm.
    inter = _gelu(_bf16_matmul(h1, i_w_ref[...]) + i_b_ref[...])
    ffn = _bf16_matmul(inter, o_w_ref[...]) + o_b_ref[...]
    h2 = _layernorm(ffn + h1, ln2_g_ref[...], ln2_b_ref[...])

    out_ref[0] = h2.astype(out_ref.dtype)


def encoder_layer(hidden, mask_b1s, lp):
    B, S, H = hidden.shape
    I = lp["i_w"].shape[1]

    def full2(shape):
        return pl.BlockSpec(shape, lambda b: (0, 0))

    return pl.pallas_call(
        _encoder_layer_kernel,
        out_shape=jax.ShapeDtypeStruct((B, S, H), jnp.float32),
        grid=(B,),
        in_specs=[
            pl.BlockSpec((1, S, H), lambda b: (b, 0, 0)),      # hidden (this batch element)
            pl.BlockSpec((1, 1, S), lambda b: (b, 0, 0)),      # additive mask
            full2((H, 3 * H)), full2((1, 3 * H)),              # fused QKV
            full2((H, H)), full2((1, H)),                      # attn output proj
            full2((1, H)), full2((1, H)),                      # LN1
            full2((H, I)), full2((1, I)),                      # FFN in (GELU)
            full2((I, H)), full2((1, H)),                      # FFN out
            full2((1, H)), full2((1, H)),                      # LN2
        ],
        out_specs=pl.BlockSpec((1, S, H), lambda b: (b, 0, 0)),
        compiler_params=pltpu.CompilerParams(dimension_semantics=("parallel",)),
    )(hidden, mask_b1s,
      lp["qkv_w"], lp["qkv_b"].reshape(1, 3 * H),
      lp["ao_w"], lp["ao_b"].reshape(1, H),
      lp["ln1_g"].reshape(1, H), lp["ln1_b"].reshape(1, H),
      lp["i_w"], lp["i_b"].reshape(1, I),
      lp["o_w"], lp["o_b"].reshape(1, H),
      lp["ln2_g"].reshape(1, H), lp["ln2_b"].reshape(1, H))


def _pooler_cls_kernel(x_ref, pw_ref, pb_ref, cw_ref, cb_ref, o_ref):
    """Fused BERT pooler (tanh) + classification head (dropout is an eval no-op)."""
    x = x_ref[...].astype(jnp.float32)                                   # [B, H]
    pooled = jnp.tanh(_bf16_matmul(x, pw_ref[...]) + pb_ref[...])
    o_ref[...] = (_bf16_matmul(pooled, cw_ref[...]) + cb_ref[...]).astype(o_ref.dtype)


def pooler_classifier(cls_tokens, pooler_w, pooler_b, cls_w, cls_b):
    B, H = cls_tokens.shape
    L = cls_w.shape[1]
    return pl.pallas_call(
        _pooler_cls_kernel,
        out_shape=jax.ShapeDtypeStruct((B, L), jnp.float32),
        grid=(1,),
        in_specs=[
            pl.BlockSpec((B, H), lambda i: (0, 0)),
            pl.BlockSpec((H, H), lambda i: (0, 0)),
            pl.BlockSpec((1, H), lambda i: (0, 0)),
            pl.BlockSpec((H, L), lambda i: (0, 0)),
            pl.BlockSpec((1, L), lambda i: (0, 0)),
        ],
        out_specs=pl.BlockSpec((B, L), lambda i: (0, 0)),
    )(cls_tokens, pooler_w, pooler_b.reshape(1, H), cls_w, cls_b.reshape(1, L))


# --------------------------- parameters (deterministic) ----------------------

def init_params(key):
    def nrm(k, shape, scale=0.02):
        return scale * jax.random.normal(k, shape, dtype=jnp.float32)

    keys = jax.random.split(key, 8 + N_LAYERS)
    params = {
        "word_emb": nrm(keys[0], (VOCAB, HIDDEN)),
        "pos_emb": nrm(keys[1], (MAX_POS, HIDDEN)),
        "type_emb": nrm(keys[2], (TYPE_VOCAB, HIDDEN)),
        "emb_ln_g": jnp.ones((HIDDEN,), jnp.float32),
        "emb_ln_b": jnp.zeros((HIDDEN,), jnp.float32),
        "pooler_w": nrm(keys[3], (HIDDEN, HIDDEN)),
        "pooler_b": jnp.zeros((HIDDEN,), jnp.float32),
        "cls_w": nrm(keys[4], (HIDDEN, NUM_LABELS)),
        "cls_b": jnp.zeros((NUM_LABELS,), jnp.float32),
        "layers": [],
    }
    for li in range(N_LAYERS):
        lk = jax.random.split(keys[8 + li], 6)
        q_w = nrm(lk[0], (HIDDEN, HIDDEN))
        k_w = nrm(lk[1], (HIDDEN, HIDDEN))
        v_w = nrm(lk[2], (HIDDEN, HIDDEN))
        params["layers"].append({
            # Q/K/V pre-fused into one [H, 3H] weight -> one MXU matmul per layer.
            "qkv_w": jnp.concatenate([q_w, k_w, v_w], axis=1),
            "qkv_b": jnp.zeros((3 * HIDDEN,), jnp.float32),
            "ao_w": nrm(lk[3], (HIDDEN, HIDDEN)), "ao_b": jnp.zeros((HIDDEN,), jnp.float32),
            "ln1_g": jnp.ones((HIDDEN,), jnp.float32), "ln1_b": jnp.zeros((HIDDEN,), jnp.float32),
            "i_w": nrm(lk[4], (HIDDEN, INTERMEDIATE)),
            "i_b": jnp.zeros((INTERMEDIATE,), jnp.float32),
            "o_w": nrm(lk[5], (INTERMEDIATE, HIDDEN)), "o_b": jnp.zeros((HIDDEN,), jnp.float32),
            "ln2_g": jnp.ones((HIDDEN,), jnp.float32), "ln2_b": jnp.zeros((HIDDEN,), jnp.float32),
        })
    return params


# --------------------------- forward (PLMVictim.forward) ---------------------

def plm_victim_forward(params, input_ids, attention_mask, token_type_ids):
    """Equivalent of self.plm(**inputs, output_hidden_states=True):
    returns dict with 'logits' and the tuple of all 'hidden_states'."""
    B, S = input_ids.shape

    # Embedding gathers stay in XLA (glue); sum + LayerNorm fused in one Pallas kernel.
    word_e = jnp.take(params["word_emb"], input_ids, axis=0)            # [B, S, H]
    pos_e = params["pos_emb"][:S][None, :, :]                           # [1, S, H]
    type_e = jnp.take(params["type_emb"], token_type_ids, axis=0)       # [B, S, H]
    hidden = embed_layernorm(word_e, pos_e, type_e,
                             params["emb_ln_g"], params["emb_ln_b"])
    all_hidden = [hidden]

    # BERT extended additive mask kept at [B, 1, S]; broadcast happens inside the kernel.
    ext_mask = ((1.0 - attention_mask.astype(jnp.float32)) * -10000.0)[:, None, :]

    for lp in params["layers"]:
        hidden = encoder_layer(hidden, ext_mask, lp)      # one fused pallas_call per layer
        all_hidden.append(hidden)

    logits = pooler_classifier(hidden[:, 0, :],
                               params["pooler_w"], params["pooler_b"],
                               params["cls_w"], params["cls_b"])
    return {"logits": logits, "hidden_states": tuple(all_hidden)}


# --------------------------- demo --------------------------------------------

if __name__ == "__main__":
    B, S = 2, 8
    key = jax.random.PRNGKey(0)
    pkey, ikey = jax.random.split(key)

    params = init_params(pkey)
    input_ids = jax.random.randint(ikey, (B, S), 0, VOCAB, dtype=jnp.int32)
    attention_mask = jnp.ones((B, S), dtype=jnp.int32)
    token_type_ids = jnp.zeros((B, S), dtype=jnp.int32)

    out = jax.jit(plm_victim_forward)(params, input_ids, attention_mask, token_type_ids)
    out = jax.block_until_ready(out)

    assert out["logits"].shape == (B, NUM_LABELS)
    assert len(out["hidden_states"]) == N_LAYERS + 1
    assert all(h.shape == (B, S, HIDDEN) for h in out["hidden_states"])
    print("KERNEL_OK")
</pallas_src>

<mosaic_0001>
module attributes {stable_mosaic.version = 11 : i64} {
  func.func @_embed_ln_kernel(%arg0: i32, %arg1: memref<1x8x32xf32, #tpu.memory_space<vmem>>, %arg2: memref<1x8x32xf32, #tpu.memory_space<vmem>>, %arg3: memref<1x8x32xf32, #tpu.memory_space<vmem>>, %arg4: memref<1x32xf32, #tpu.memory_space<vmem>>, %arg5: memref<1x32xf32, #tpu.memory_space<vmem>>, %arg6: memref<1x8x32xf32, #tpu.memory_space<vmem>>) attributes {dimension_semantics = [#tpu.dimension_semantics<parallel>], iteration_bounds = array<i64: 2>, scalar_prefetch = 0 : i64, scratch_operands = 0 : i64, tpu.core_type = #tpu.core_type<tc>, window_params = [{transform_indices = @transform_0, window_bounds = array<i64: 1, 8, 32>}, {pipeline_mode = #tpu.pipeline_mode<synchronous>, transform_indices = @transform_1, window_bounds = array<i64: 1, 8, 32>}, {transform_indices = @transform_2, window_bounds = array<i64: 1, 8, 32>}, {pipeline_mode = #tpu.pipeline_mode<synchronous>, transform_indices = @transform_3, window_bounds = array<i64: 1, 32>}, {pipeline_mode = #tpu.pipeline_mode<synchronous>, transform_indices = @transform_4, window_bounds = array<i64: 1, 32>}, {transform_indices = @transform_5, window_bounds = array<i64: 1, 8, 32>}]} {
    %c0 = arith.constant 0 : index
    %c0_0 = arith.constant 0 : index
    %c0_1 = arith.constant 0 : index
    %0 = vector.load %arg1[%c0, %c0_0, %c0_1] : memref<1x8x32xf32, #tpu.memory_space<vmem>>, vector<1x8x32xf32>
    %1 = vector.shape_cast %0 : vector<1x8x32xf32> to vector<8x32xf32>
    %c0_2 = arith.constant 0 : index
    %c0_3 = arith.constant 0 : index
    %c0_4 = arith.constant 0 : index
    %2 = vector.load %arg2[%c0_2, %c0_3, %c0_4] : memref<1x8x32xf32, #tpu.memory_space<vmem>>, vector<1x8x32xf32>
    %3 = vector.shape_cast %2 : vector<1x8x32xf32> to vector<8x32xf32>
    %4 = arith.addf %1, %3 : vector<8x32xf32>
    %c0_5 = arith.constant 0 : index
    %c0_6 = arith.constant 0 : index
    %c0_7 = arith.constant 0 : index
    %5 = vector.load %arg3[%c0_5, %c0_6, %c0_7] : memref<1x8x32xf32, #tpu.memory_space<vmem>>, vector<1x8x32xf32>
    %6 = vector.shape_cast %5 : vector<1x8x32xf32> to vector<8x32xf32>
    %7 = arith.addf %4, %6 : vector<8x32xf32>
    %c0_8 = arith.constant 0 : index
    %c0_9 = arith.constant 0 : index
    %8 = vector.load %arg4[%c0_8, %c0_9] : memref<1x32xf32, #tpu.memory_space<vmem>>, vector<1x32xf32>
    %c0_10 = arith.constant 0 : index
    %c0_11 = arith.constant 0 : index
    %9 = vector.load %arg5[%c0_10, %c0_11] : memref<1x32xf32, #tpu.memory_space<vmem>>, vector<1x32xf32>
    %cst = arith.constant dense<0.000000e+00> : vector<8xf32>
    %10 = vector.multi_reduction <add>, %7, %cst [1] : vector<8x32xf32> to vector<8xf32>
    %11 = vector.shape_cast %10 : vector<8xf32> to vector<8x1xf32>
    %cst_12 = arith.constant 3.200000e+01 : f32
    %12 = vector.broadcast %cst_12 : f32 to vector<8x1xf32>
    %13 = arith.divf %11, %12 : vector<8x1xf32>
    %14 = vector.broadcast %13 : vector<8x1xf32> to vector<8x32xf32>
    %15 = arith.subf %7, %14 : vector<8x32xf32>
    %16 = arith.mulf %15, %15 : vector<8x32xf32>
    %cst_13 = arith.constant dense<0.000000e+00> : vector<8xf32>
    %17 = vector.multi_reduction <add>, %16, %cst_13 [1] : vector<8x32xf32> to vector<8xf32>
    %18 = vector.shape_cast %17 : vector<8xf32> to vector<8x1xf32>
    %cst_14 = arith.constant 3.200000e+01 : f32
    %19 = vector.broadcast %cst_14 : f32 to vector<8x1xf32>
    %20 = arith.divf %18, %19 : vector<8x1xf32>
    %cst_15 = arith.constant 9.99999996E-13 : f32
    %21 = vector.broadcast %cst_15 : f32 to vector<8x1xf32>
    %22 = arith.addf %20, %21 : vector<8x1xf32>
    %23 = math.rsqrt %22 : vector<8x1xf32>
    %24 = vector.broadcast %23 : vector<8x1xf32> to vector<8x32xf32>
    %25 = arith.mulf %15, %24 : vector<8x32xf32>
    %26 = vector.broadcast %8 : vector<1x32xf32> to vector<8x32xf32>
    %27 = arith.mulf %25, %26 : vector<8x32xf32>
    %28 = vector.broadcast %9 : vector<1x32xf32> to vector<8x32xf32>
    %29 = arith.addf %27, %28 : vector<8x32xf32>
    %c0_16 = arith.constant 0 : index
    %c0_17 = arith.constant 0 : index
    %c0_18 = arith.constant 0 : index
    %30 = vector.load %arg6[%c0_16, %c0_17, %c0_18] : memref<1x8x32xf32, #tpu.memory_space<vmem>>, vector<1x8x32xf32>
    %31 = vector.shape_cast %30 : vector<1x8x32xf32> to vector<8x32xf32>
    %32 = vector.shape_cast %29 : vector<8x32xf32> to vector<1x8x32xf32>
    tpu.vector_store %arg6[%c0_16, %c0_17, %c0_18], %32 {strides = array<i32>} : memref<1x8x32xf32, #tpu.memory_space<vmem>>, vector<1x8x32xf32>,
    return
  }
  func.func @transform_0(%arg0: i32) -> (i32, i32, i32) {
    %c0_i32 = arith.constant 0 : i32
    %c0_i32_0 = arith.constant 0 : i32
    %c0_i32_1 = arith.constant 0 : i32
    return %arg0, %c0_i32, %c0_i32_0 : i32, i32, i32
  }
  func.func @transform_1(%arg0: i32) -> (i32, i32, i32) {
    %c0_i32 = arith.constant 0 : i32
    %c0_i32_0 = arith.constant 0 : i32
    %c0_i32_1 = arith.constant 0 : i32
    %c0_i32_2 = arith.constant 0 : i32
    return %c0_i32, %c0_i32_0, %c0_i32_1 : i32, i32, i32
  }
  func.func @transform_2(%arg0: i32) -> (i32, i32, i32) {
    %c0_i32 = arith.constant 0 : i32
    %c0_i32_0 = arith.constant 0 : i32
    %c0_i32_1 = arith.constant 0 : i32
    return %arg0, %c0_i32, %c0_i32_0 : i32, i32, i32
  }
  func.func @transform_3(%arg0: i32) -> (i32, i32) {
    %c0_i32 = arith.constant 0 : i32
    %c0_i32_0 = arith.constant 0 : i32
    %c0_i32_1 = arith.constant 0 : i32
    return %c0_i32, %c0_i32_0 : i32, i32
  }
  func.func @transform_4(%arg0: i32) -> (i32, i32) {
    %c0_i32 = arith.constant 0 : i32
    %c0_i32_0 = arith.constant 0 : i32
    %c0_i32_1 = arith.constant 0 : i32
    return %c0_i32, %c0_i32_0 : i32, i32
  }
  func.func @transform_5(%arg0: i32) -> (i32, i32, i32) {
    %c0_i32 = arith.constant 0 : i32
    %c0_i32_0 = arith.constant 0 : i32
    %c0_i32_1 = arith.constant 0 : i32
    return %arg0, %c0_i32, %c0_i32_0 : i32, i32, i32
  }
}

module attributes {stable_mosaic.version = 11 : i64} {
  func.func @_encoder_layer_kernel(%arg0: i32, %arg1: memref<1x8x32xf32, #tpu.memory_space<vmem>>, %arg2: memref<1x1x8xf32, #tpu.memory_space<vmem>>, %arg3: memref<32x96xf32, #tpu.memory_space<vmem>>, %arg4: memref<1x96xf32, #tpu.memory_space<vmem>>, %arg5: memref<32x32xf32, #tpu.memory_space<vmem>>, %arg6: memref<1x32xf32, #tpu.memory_space<vmem>>, %arg7: memref<1x32xf32, #tpu.memory_space<vmem>>, %arg8: memref<1x32xf32, #tpu.memory_space<vmem>>, %arg9: memref<32x64xf32, #tpu.memory_space<vmem>>, %arg10: memref<1x64xf32, #tpu.memory_space<vmem>>, %arg11: memref<64x32xf32, #tpu.memory_space<vmem>>, %arg12: memref<1x32xf32, #tpu.memory_space<vmem>>, %arg13: memref<1x32xf32, #tpu.memory_space<vmem>>, %arg14: memref<1x32xf32, #tpu.memory_space<vmem>>, %arg15: memref<1x8x32xf32, #tpu.memory_space<vmem>>) attributes {dimension_semantics = [#tpu.dimension_semantics<parallel>], iteration_bounds = array<i64: 2>, scalar_prefetch = 0 : i64, scratch_operands = 0 : i64, tpu.core_type = #tpu.core_type<tc>, window_params = [{transform_indices = @transform_0, window_bounds = array<i64: 1, 8, 32>}, {transform_indices = @transform_1, window_bounds = array<i64: 1, 1, 8>}, {pipeline_mode = #tpu.pipeline_mode<synchronous>, transform_indices = @transform_2, window_bounds = array<i64: 32, 96>}, {pipeline_mode = #tpu.pipeline_mode<synchronous>, transform_indices = @transform_3, window_bounds = array<i64: 1, 96>}, {pipeline_mode = #tpu.pipeline_mode<synchronous>, transform_indices = @transform_4, window_bounds = array<i64: 32, 32>}, {pipeline_mode = #tpu.pipeline_mode<synchronous>, transform_indices = @transform_5, window_bounds = array<i64: 1, 32>}, {pipeline_mode = #tpu.pipeline_mode<synchronous>, transform_indices = @transform_6, window_bounds = array<i64: 1, 32>}, {pipeline_mode = #tpu.pipeline_mode<synchronous>, transform_indices = @transform_7, window_bounds = array<i64: 1, 32>}, {pipeline_mode = #tpu.pipeline_mode<synchronous>, transform_indices = @transform_8, window_bounds = array<i64: 32, 64>}, {pipeline_mode = #tpu.pipeline_mode<synchronous>, transform_indices = @transform_9, window_bounds = array<i64: 1, 64>}, {pipeline_mode = #tpu.pipeline_mode<synchronous>, transform_indices = @transform_10, window_bounds = array<i64: 64, 32>}, {pipeline_mode = #tpu.pipeline_mode<synchronous>, transform_indices = @transform_11, window_bounds = array<i64: 1, 32>}, {pipeline_mode = #tpu.pipeline_mode<synchronous>, transform_indices = @transform_12, window_bounds = array<i64: 1, 32>}, {pipeline_mode = #tpu.pipeline_mode<synchronous>, transform_indices = @transform_13, window_bounds = array<i64: 1, 32>}, {transform_indices = @transform_14, window_bounds = array<i64: 1, 8, 32>}]} {
    %c0 = arith.constant 0 : index
    %c0_0 = arith.constant 0 : index
    %c0_1 = arith.constant 0 : index
    %0 = vector.load %arg1[%c0, %c0_0, %c0_1] : memref<1x8x32xf32, #tpu.memory_space<vmem>>, vector<1x8x32xf32>
    %1 = vector.shape_cast %0 : vector<1x8x32xf32> to vector<8x32xf32>
    %c0_2 = arith.constant 0 : index
    %c0_3 = arith.constant 0 : index
    %c0_4 = arith.constant 0 : index
    %2 = vector.load %arg2[%c0_2, %c0_3, %c0_4] : memref<1x1x8xf32, #tpu.memory_space<vmem>>, vector<1x1x8xf32>
    %3 = vector.shape_cast %2 : vector<1x1x8xf32> to vector<1x8xf32>
    %c0_5 = arith.constant 0 : index
    %c0_6 = arith.constant 0 : index
    %4 = vector.load %arg3[%c0_5, %c0_6] : memref<32x96xf32, #tpu.memory_space<vmem>>, vector<32x96xf32>
    %5 = arith.truncf %1 : vector<8x32xf32> to vector<8x32xbf16>
    %6 = arith.truncf %4 : vector<32x96xf32> to vector<32x96xbf16>
    %cst = arith.constant dense<0.000000e+00> : vector<8x96xf32>
    %7 = tpu.matmul %5, %6, %cst {dimension_numbers = #tpu.dot_dimension_numbers<[1], [0], [0], [1], [0, 0, 1, 1], [], []>} : vector<8x32xbf16>, vector<32x96xbf16>, vector<8x96xf32> -> vector<8x96xf32>
    %c0_7 = arith.constant 0 : index
    %c0_8 = arith.constant 0 : index
    %8 = vector.load %arg4[%c0_7, %c0_8] : memref<1x96xf32, #tpu.memory_space<vmem>>, vector<1x96xf32>
    %9 = vector.broadcast %8 : vector<1x96xf32> to vector<8x96xf32>
    %10 = arith.addf %7, %9 : vector<8x96xf32>
    %11 = vector.extract_strided_slice %10 {offsets = [0, 0], sizes = [8, 16], strides = [1, 1]} : vector<8x96xf32> to vector<8x16xf32>
    %12 = vector.extract_strided_slice %10 {offsets = [0, 32], sizes = [8, 16], strides = [1, 1]} : vector<8x96xf32> to vector<8x16xf32>
    %13 = vector.extract_strided_slice %10 {offsets = [0, 64], sizes = [8, 16], strides = [1, 1]} : vector<8x96xf32> to vector<8x16xf32>
    %14 = tpu.transpose %12, [1, 0] : vector<8x16xf32> -> vector<16x8xf32>
    %15 = arith.truncf %11 : vector<8x16xf32> to vector<8x16xbf16>
    %16 = arith.truncf %14 : vector<16x8xf32> to vector<16x8xbf16>
    %cst_9 = arith.constant dense<0.000000e+00> : vector<8x8xf32>
    %17 = tpu.matmul %15, %16, %cst_9 {dimension_numbers = #tpu.dot_dimension_numbers<[1], [0], [0], [1], [0, 0, 1, 1], [], []>} : vector<8x16xbf16>, vector<16x8xbf16>, vector<8x8xf32> -> vector<8x8xf32>
    %cst_10 = arith.constant 2.500000e-01 : f32
    %18 = vector.broadcast %cst_10 : f32 to vector<8x8xf32>
    %19 = arith.mulf %17, %18 : vector<8x8xf32>
    %20 = vector.broadcast %3 : vector<1x8xf32> to vector<8x8xf32>
    %21 = arith.addf %19, %20 : vector<8x8xf32>
    %cst_11 = arith.constant dense<0xFF800000> : vector<8xf32>
    %22 = vector.multi_reduction <maximumf>, %21, %cst_11 [1] : vector<8x8xf32> to vector<8xf32>
    %23 = vector.shape_cast %22 : vector<8xf32> to vector<8x1xf32>
    %24 = vector.broadcast %23 : vector<8x1xf32> to vector<8x8xf32>
    %25 = arith.subf %21, %24 : vector<8x8xf32>
    %26 = math.exp %25 : vector<8x8xf32>
    %cst_12 = arith.constant dense<0.000000e+00> : vector<8xf32>
    %27 = vector.multi_reduction <add>, %26, %cst_12 [1] : vector<8x8xf32> to vector<8xf32>
    %28 = vector.shape_cast %27 : vector<8xf32> to vector<8x1xf32>
    %29 = tpu.reciprocal %28 {approx = true} : vector<8x1xf32> -> vector<8x1xf32>
    %30 = vector.broadcast %29 : vector<8x1xf32> to vector<8x8xf32>
    %31 = arith.mulf %26, %30 : vector<8x8xf32>
    %32 = arith.truncf %31 : vector<8x8xf32> to vector<8x8xbf16>
    %33 = arith.truncf %13 : vector<8x16xf32> to vector<8x16xbf16>
    %cst_13 = arith.constant dense<0.000000e+00> : vector<8x16xf32>
    %34 = tpu.matmul %32, %33, %cst_13 {dimension_numbers = #tpu.dot_dimension_numbers<[1], [0], [0], [1], [0, 0, 1, 1], [], []>} : vector<8x8xbf16>, vector<8x16xbf16>, vector<8x16xf32> -> vector<8x16xf32>
    %35 = vector.extract_strided_slice %10 {offsets = [0, 16], sizes = [8, 16], strides = [1, 1]} : vector<8x96xf32> to vector<8x16xf32>
    %36 = vector.extract_strided_slice %10 {offsets = [0, 48], sizes = [8, 16], strides = [1, 1]} : vector<8x96xf32> to vector<8x16xf32>
    %37 = vector.extract_strided_slice %10 {offsets = [0, 80], sizes = [8, 16], strides = [1, 1]} : vector<8x96xf32> to vector<8x16xf32>
    %38 = tpu.transpose %36, [1, 0] : vector<8x16xf32> -> vector<16x8xf32>
    %39 = arith.truncf %35 : vector<8x16xf32> to vector<8x16xbf16>
    %40 = arith.truncf %38 : vector<16x8xf32> to vector<16x8xbf16>
    %cst_14 = arith.constant dense<0.000000e+00> : vector<8x8xf32>
    %41 = tpu.matmul %39, %40, %cst_14 {dimension_numbers = #tpu.dot_dimension_numbers<[1], [0], [0], [1], [0, 0, 1, 1], [], []>} : vector<8x16xbf16>, vector<16x8xbf16>, vector<8x8xf32> -> vector<8x8xf32>
    %cst_15 = arith.constant 2.500000e-01 : f32
    %42 = vector.broadcast %cst_15 : f32 to vector<8x8xf32>
    %43 = arith.mulf %41, %42 : vector<8x8xf32>
    %44 = vector.broadcast %3 : vector<1x8xf32> to vector<8x8xf32>
    %45 = arith.addf %43, %44 : vector<8x8xf32>
    %cst_16 = arith.constant dense<0xFF800000> : vector<8xf32>
    %46 = vector.multi_reduction <maximumf>, %45, %cst_16 [1] : vector<8x8xf32> to vector<8xf32>
    %47 = vector.shape_cast %46 : vector<8xf32> to vector<8x1xf32>
    %48 = vector.broadcast %47 : vector<8x1xf32> to vector<8x8xf32>
    %49 = arith.subf %45, %48 : vector<8x8xf32>
    %50 = math.exp %49 : vector<8x8xf32>
    %cst_17 = arith.constant dense<0.000000e+00> : vector<8xf32>
    %51 = vector.multi_reduction <add>, %50, %cst_17 [1] : vector<8x8xf32> to vector<8xf32>
    %52 = vector.shape_cast %51 : vector<8xf32> to vector<8x1xf32>
    %53 = tpu.reciprocal %52 {approx = true} : vector<8x1xf32> -> vector<8x1xf32>
    %54 = vector.broadcast %53 : vector<8x1xf32> to vector<8x8xf32>
    %55 = arith.mulf %50, %54 : vector<8x8xf32>
    %56 = arith.truncf %55 : vector<8x8xf32> to vector<8x8xbf16>
    %57 = arith.truncf %37 : vector<8x16xf32> to vector<8x16xbf16>
    %cst_18 = arith.constant dense<0.000000e+00> : vector<8x16xf32>
    %58 = tpu.matmul %56, %57, %cst_18 {dimension_numbers = #tpu.dot_dimension_numbers<[1], [0], [0], [1], [0, 0, 1, 1], [], []>} : vector<8x8xbf16>, vector<8x16xbf16>, vector<8x16xf32> -> vector<8x16xf32>
    %59 = tpu.concatenate %34, %58 in 1 : vector<8x16xf32>, vector<8x16xf32> -> vector<8x32xf32>
    %c0_19 = arith.constant 0 : index
    %c0_20 = arith.constant 0 : index
    %60 = vector.load %arg5[%c0_19, %c0_20] : memref<32x32xf32, #tpu.memory_space<vmem>>, vector<32x32xf32>
    %61 = arith.truncf %59 : vector<8x32xf32> to vector<8x32xbf16>
    %62 = arith.truncf %60 : vector<32x32xf32> to vector<32x32xbf16>
    %cst_21 = arith.constant dense<0.000000e+00> : vector<8x32xf32>
    %63 = tpu.matmul %61, %62, %cst_21 {dimension_numbers = #tpu.dot_dimension_numbers<[1], [0], [0], [1], [0, 0, 1, 1], [], []>} : vector<8x32xbf16>, vector<32x32xbf16>, vector<8x32xf32> -> vector<8x32xf32>
    %c0_22 = arith.constant 0 : index
    %c0_23 = arith.constant 0 : index
    %64 = vector.load %arg6[%c0_22, %c0_23] : memref<1x32xf32, #tpu.memory_space<vmem>>, vector<1x32xf32>
    %65 = vector.broadcast %64 : vector<1x32xf32> to vector<8x32xf32>
    %66 = arith.addf %63, %65 : vector<8x32xf32>
    %67 = arith.addf %66, %1 : vector<8x32xf32>
    %c0_24 = arith.constant 0 : index
    %c0_25 = arith.constant 0 : index
    %68 = vector.load %arg7[%c0_24, %c0_25] : memref<1x32xf32, #tpu.memory_space<vmem>>, vector<1x32xf32>
    %c0_26 = arith.constant 0 : index
    %c0_27 = arith.constant 0 : index
    %69 = vector.load %arg8[%c0_26, %c0_27] : memref<1x32xf32, #tpu.memory_space<vmem>>, vector<1x32xf32>
    %cst_28 = arith.constant dense<0.000000e+00> : vector<8xf32>
    %70 = vector.multi_reduction <add>, %67, %cst_28 [1] : vector<8x32xf32> to vector<8xf32>
    %71 = vector.shape_cast %70 : vector<8xf32> to vector<8x1xf32>
    %cst_29 = arith.constant 3.200000e+01 : f32
    %72 = vector.broadcast %cst_29 : f32 to vector<8x1xf32>
    %73 = arith.divf %71, %72 : vector<8x1xf32>
    %74 = vector.broadcast %73 : vector<8x1xf32> to vector<8x32xf32>
    %75 = arith.subf %67, %74 : vector<8x32xf32>
    %76 = arith.mulf %75, %75 : vector<8x32xf32>
    %cst_30 = arith.constant dense<0.000000e+00> : vector<8xf32>
    %77 = vector.multi_reduction <add>, %76, %cst_30 [1] : vector<8x32xf32> to vector<8xf32>
    %78 = vector.shape_cast %77 : vector<8xf32> to vector<8x1xf32>
    %cst_31 = arith.constant 3.200000e+01 : f32
    %79 = vector.broadcast %cst_31 : f32 to vector<8x1xf32>
    %80 = arith.divf %78, %79 : vector<8x1xf32>
    %cst_32 = arith.constant 9.99999996E-13 : f32
    %81 = vector.broadcast %cst_32 : f32 to vector<8x1xf32>
    %82 = arith.addf %80, %81 : vector<8x1xf32>
    %83 = math.rsqrt %82 : vector<8x1xf32>
    %84 = vector.broadcast %83 : vector<8x1xf32> to vector<8x32xf32>
    %85 = arith.mulf %75, %84 : vector<8x32xf32>
    %86 = vector.broadcast %68 : vector<1x32xf32> to vector<8x32xf32>
    %87 = arith.mulf %85, %86 : vector<8x32xf32>
    %88 = vector.broadcast %69 : vector<1x32xf32> to vector<8x32xf32>
    %89 = arith.addf %87, %88 : vector<8x32xf32>
    %c0_33 = arith.constant 0 : index
    %c0_34 = arith.constant 0 : index
    %90 = vector.load %arg9[%c0_33, %c0_34] : memref<32x64xf32, #tpu.memory_space<vmem>>, vector<32x64xf32>
    %91 = arith.truncf %89 : vector<8x32xf32> to vector<8x32xbf16>
    %92 = arith.truncf %90 : vector<32x64xf32> to vector<32x64xbf16>
    %cst_35 = arith.constant dense<0.000000e+00> : vector<8x64xf32>
    %93 = tpu.matmul %91, %92, %cst_35 {dimension_numbers = #tpu.dot_dimension_numbers<[1], [0], [0], [1], [0, 0, 1, 1], [], []>} : vector<8x32xbf16>, vector<32x64xbf16>, vector<8x64xf32> -> vector<8x64xf32>
    %c0_36 = arith.constant 0 : index
    %c0_37 = arith.constant 0 : index
    %94 = vector.load %arg10[%c0_36, %c0_37] : memref<1x64xf32, #tpu.memory_space<vmem>>, vector<1x64xf32>
    %95 = vector.broadcast %94 : vector<1x64xf32> to vector<8x64xf32>
    %96 = arith.addf %93, %95 : vector<8x64xf32>
    %cst_38 = arith.constant 5.000000e-01 : f32
    %97 = vector.broadcast %cst_38 : f32 to vector<8x64xf32>
    %98 = arith.mulf %97, %96 : vector<8x64xf32>
    %cst_39 = arith.constant 4.471500e-02 : f32
    %99 = vector.broadcast %cst_39 : f32 to vector<8x64xf32>
    %100 = arith.mulf %99, %96 : vector<8x64xf32>
    %101 = arith.mulf %100, %96 : vector<8x64xf32>
    %102 = arith.mulf %101, %96 : vector<8x64xf32>
    %103 = arith.addf %96, %102 : vector<8x64xf32>
    %cst_40 = arith.constant 0.797884583 : f32
    %104 = vector.broadcast %cst_40 : f32 to vector<8x64xf32>
    %105 = arith.mulf %104, %103 : vector<8x64xf32>
    %106 = math.tanh %105 : vector<8x64xf32>
    %cst_41 = arith.constant 1.000000e+00 : f32
    %107 = vector.broadcast %cst_41 : f32 to vector<8x64xf32>
    %108 = arith.addf %107, %106 : vector<8x64xf32>
    %109 = arith.mulf %98, %108 : vector<8x64xf32>
    %c0_42 = arith.constant 0 : index
    %c0_43 = arith.constant 0 : index
    %110 = vector.load %arg11[%c0_42, %c0_43] : memref<64x32xf32, #tpu.memory_space<vmem>>, vector<64x32xf32>
    %111 = arith.truncf %109 : vector<8x64xf32> to vector<8x64xbf16>
    %112 = arith.truncf %110 : vector<64x32xf32> to vector<64x32xbf16>
    %cst_44 = arith.constant dense<0.000000e+00> : vector<8x32xf32>
    %113 = tpu.matmul %111, %112, %cst_44 {dimension_numbers = #tpu.dot_dimension_numbers<[1], [0], [0], [1], [0, 0, 1, 1], [], []>} : vector<8x64xbf16>, vector<64x32xbf16>, vector<8x32xf32> -> vector<8x32xf32>
    %c0_45 = arith.constant 0 : index
    %c0_46 = arith.constant 0 : index
    %114 = vector.load %arg12[%c0_45, %c0_46] : memref<1x32xf32, #tpu.memory_space<vmem>>, vector<1x32xf32>
    %115 = vector.broadcast %114 : vector<1x32xf32> to vector<8x32xf32>
    %116 = arith.addf %113, %115 : vector<8x32xf32>
    %117 = arith.addf %116, %89 : vector<8x32xf32>
    %c0_47 = arith.constant 0 : index
    %c0_48 = arith.constant 0 : index
    %118 = vector.load %arg13[%c0_47, %c0_48] : memref<1x32xf32, #tpu.memory_space<vmem>>, vector<1x32xf32>
    %c0_49 = arith.constant 0 : index
    %c0_50 = arith.constant 0 : index
    %119 = vector.load %arg14[%c0_49, %c0_50] : memref<1x32xf32, #tpu.memory_space<vmem>>, vector<1x32xf32>
    %cst_51 = arith.constant dense<0.000000e+00> : vector<8xf32>
    %120 = vector.multi_reduction <add>, %117, %cst_51 [1] : vector<8x32xf32> to vector<8xf32>
    %121 = vector.shape_cast %120 : vector<8xf32> to vector<8x1xf32>
    %cst_52 = arith.constant 3.200000e+01 : f32
    %122 = vector.broadcast %cst_52 : f32 to vector<8x1xf32>
    %123 = arith.divf %121, %122 : vector<8x1xf32>
    %124 = vector.broadcast %123 : vector<8x1xf32> to vector<8x32xf32>
    %125 = arith.subf %117, %124 : vector<8x32xf32>
    %126 = arith.mulf %125, %125 : vector<8x32xf32>
    %cst_53 = arith.constant dense<0.000000e+00> : vector<8xf32>
    %127 = vector.multi_reduction <add>, %126, %cst_53 [1] : vector<8x32xf32> to vector<8xf32>
    %128 = vector.shape_cast %127 : vector<8xf32> to vector<8x1xf32>
    %cst_54 = arith.constant 3.200000e+01 : f32
    %129 = vector.broadcast %cst_54 : f32 to vector<8x1xf32>
    %130 = arith.divf %128, %129 : vector<8x1xf32>
    %cst_55 = arith.constant 9.99999996E-13 : f32
    %131 = vector.broadcast %cst_55 : f32 to vector<8x1xf32>
    %132 = arith.addf %130, %131 : vector<8x1xf32>
    %133 = math.rsqrt %132 : vector<8x1xf32>
    %134 = vector.broadcast %133 : vector<8x1xf32> to vector<8x32xf32>
    %135 = arith.mulf %125, %134 : vector<8x32xf32>
    %136 = vector.broadcast %118 : vector<1x32xf32> to vector<8x32xf32>
    %137 = arith.mulf %135, %136 : vector<8x32xf32>
    %138 = vector.broadcast %119 : vector<1x32xf32> to vector<8x32xf32>
    %139 = arith.addf %137, %138 : vector<8x32xf32>
    %c0_56 = arith.constant 0 : index
    %c0_57 = arith.constant 0 : index
    %c0_58 = arith.constant 0 : index
    %140 = vector.load %arg15[%c0_56, %c0_57, %c0_58] : memref<1x8x32xf32, #tpu.memory_space<vmem>>, vector<1x8x32xf32>
    %141 = vector.shape_cast %140 : vector<1x8x32xf32> to vector<8x32xf32>
    %142 = vector.shape_cast %139 : vector<8x32xf32> to vector<1x8x32xf32>
    tpu.vector_store %arg15[%c0_56, %c0_57, %c0_58], %142 {strides = array<i32>} : memref<1x8x32xf32, #tpu.memory_space<vmem>>, vector<1x8x32xf32>,
    return
  }
  func.func @transform_0(%arg0: i32) -> (i32, i32, i32) {
    %c0_i32 = arith.constant 0 : i32
    %c0_i32_0 = arith.constant 0 : i32
    %c0_i32_1 = arith.constant 0 : i32
    return %arg0, %c0_i32, %c0_i32_0 : i32, i32, i32
  }
  func.func @transform_1(%arg0: i32) -> (i32, i32, i32) {
    %c0_i32 = arith.constant 0 : i32
    %c0_i32_0 = arith.constant 0 : i32
    %c0_i32_1 = arith.constant 0 : i32
    return %arg0, %c0_i32, %c0_i32_0 : i32, i32, i32
  }
  func.func @transform_2(%arg0: i32) -> (i32, i32) {
    %c0_i32 = arith.constant 0 : i32
    %c0_i32_0 = arith.constant 0 : i32
    %c0_i32_1 = arith.constant 0 : i32
    return %c0_i32, %c0_i32_0 : i32, i32
  }
  func.func @transform_3(%arg0: i32) -> (i32, i32) {
    %c0_i32 = arith.constant 0 : i32
    %c0_i32_0 = arith.constant 0 : i32
    %c0_i32_1 = arith.constant 0 : i32
    return %c0_i32, %c0_i32_0 : i32, i32
  }
  func.func @transform_4(%arg0: i32) -> (i32, i32) {
    %c0_i32 = arith.constant 0 : i32
    %c0_i32_0 = arith.constant 0 : i32
    %c0_i32_1 = arith.constant 0 : i32
    return %c0_i32, %c0_i32_0 : i32, i32
  }
  func.func @transform_5(%arg0: i32) -> (i32, i32) {
    %c0_i32 = arith.constant 0 : i32
    %c0_i32_0 = arith.constant 0 : i32
    %c0_i32_1 = arith.constant 0 : i32
    return %c0_i32, %c0_i32_0 : i32, i32
  }
  func.func @transform_6(%arg0: i32) -> (i32, i32) {
    %c0_i32 = arith.constant 0 : i32
    %c0_i32_0 = arith.constant 0 : i32
    %c0_i32_1 = arith.constant 0 : i32
    return %c0_i32, %c0_i32_0 : i32, i32
  }
  func.func @transform_7(%arg0: i32) -> (i32, i32) {
    %c0_i32 = arith.constant 0 : i32
    %c0_i32_0 = arith.constant 0 : i32
    %c0_i32_1 = arith.constant 0 : i32
    return %c0_i32, %c0_i32_0 : i32, i32
  }
  func.func @transform_8(%arg0: i32) -> (i32, i32) {
    %c0_i32 = arith.constant 0 : i32
    %c0_i32_0 = arith.constant 0 : i32
    %c0_i32_1 = arith.constant 0 : i32
    return %c0_i32, %c0_i32_0 : i32, i32
  }
  func.func @transform_9(%arg0: i32) -> (i32, i32) {
    %c0_i32 = arith.constant 0 : i32
    %c0_i32_0 = arith.constant 0 : i32
    %c0_i32_1 = arith.constant 0 : i32
    return %c0_i32, %c0_i32_0 : i32, i32
  }
  func.func @transform_10(%arg0: i32) -> (i32, i32) {
    %c0_i32 = arith.constant 0 : i32
    %c0_i32_0 = arith.constant 0 : i32
    %c0_i32_1 = arith.constant 0 : i32
    return %c0_i32, %c0_i32_0 : i32, i32
  }
  func.func @transform_11(%arg0: i32) -> (i32, i32) {
    %c0_i32 = arith.constant 0 : i32
    %c0_i32_0 = arith.constant 0 : i32
    %c0_i32_1 = arith.constant 0 : i32
    return %c0_i32, %c0_i32_0 : i32, i32
  }
  func.func @transform_12(%arg0: i32) -> (i32, i32) {
    %c0_i32 = arith.constant 0 : i32
    %c0_i32_0 = arith.constant 0 : i32
    %c0_i32_1 = arith.constant 0 : i32
    return %c0_i32, %c0_i32_0 : i32, i32
  }
  func.func @transform_13(%arg0: i32) -> (i32, i32) {
    %c0_i32 = arith.constant 0 : i32
    %c0_i32_0 = arith.constant 0 : i32
    %c0_i32_1 = arith.constant 0 : i32
    return %c0_i32, %c0_i32_0 : i32, i32
  }
  func.func @transform_14(%arg0: i32) -> (i32, i32, i32) {
    %c0_i32 = arith.constant 0 : i32
    %c0_i32_0 = arith.constant 0 : i32
    %c0_i32_1 = arith.constant 0 : i32
    return %arg0, %c0_i32, %c0_i32_0 : i32, i32, i32
  }
}

module attributes {stable_mosaic.version = 11 : i64} {
  func.func @_pooler_cls_kernel(%arg0: i32, %arg1: memref<2x32xf32, #tpu.memory_space<vmem>>, %arg2: memref<32x32xf32, #tpu.memory_space<vmem>>, %arg3: memref<1x32xf32, #tpu.memory_space<vmem>>, %arg4: memref<32x2xf32, #tpu.memory_space<vmem>>, %arg5: memref<1x2xf32, #tpu.memory_space<vmem>>, %arg6: memref<2x2xf32, #tpu.memory_space<vmem>>) attributes {dimension_semantics = [#tpu.dimension_semantics<arbitrary>], iteration_bounds = array<i64: 1>, scalar_prefetch = 0 : i64, scratch_operands = 0 : i64, tpu.core_type = #tpu.core_type<tc>, window_params = [{pipeline_mode = #tpu.pipeline_mode<synchronous>, transform_indices = @transform_0, window_bounds = array<i64: 2, 32>}, {pipeline_mode = #tpu.pipeline_mode<synchronous>, transform_indices = @transform_1, window_bounds = array<i64: 32, 32>}, {pipeline_mode = #tpu.pipeline_mode<synchronous>, transform_indices = @transform_2, window_bounds = array<i64: 1, 32>}, {pipeline_mode = #tpu.pipeline_mode<synchronous>, transform_indices = @transform_3, window_bounds = array<i64: 32, 2>}, {pipeline_mode = #tpu.pipeline_mode<synchronous>, transform_indices = @transform_4, window_bounds = array<i64: 1, 2>}, {pipeline_mode = #tpu.pipeline_mode<synchronous>, transform_indices = @transform_5, window_bounds = array<i64: 2, 2>}]} {
    %c0 = arith.constant 0 : index
    %c0_0 = arith.constant 0 : index
    %0 = vector.load %arg1[%c0, %c0_0] : memref<2x32xf32, #tpu.memory_space<vmem>>, vector<2x32xf32>
    %c0_1 = arith.constant 0 : index
    %c0_2 = arith.constant 0 : index
    %1 = vector.load %arg2[%c0_1, %c0_2] : memref<32x32xf32, #tpu.memory_space<vmem>>, vector<32x32xf32>
    %2 = arith.truncf %0 : vector<2x32xf32> to vector<2x32xbf16>
    %3 = arith.truncf %1 : vector<32x32xf32> to vector<32x32xbf16>
    %cst = arith.constant dense<0.000000e+00> : vector<2x32xf32>
    %4 = tpu.matmul %2, %3, %cst {dimension_numbers = #tpu.dot_dimension_numbers<[1], [0], [0], [1], [0, 0, 1, 1], [], []>} : vector<2x32xbf16>, vector<32x32xbf16>, vector<2x32xf32> -> vector<2x32xf32>
    %c0_3 = arith.constant 0 : index
    %c0_4 = arith.constant 0 : index
    %5 = vector.load %arg3[%c0_3, %c0_4] : memref<1x32xf32, #tpu.memory_space<vmem>>, vector<1x32xf32>
    %6 = vector.broadcast %5 : vector<1x32xf32> to vector<2x32xf32>
    %7 = arith.addf %4, %6 : vector<2x32xf32>
    %8 = math.tanh %7 : vector<2x32xf32>
    %c0_5 = arith.constant 0 : index
    %c0_6 = arith.constant 0 : index
    %9 = vector.load %arg4[%c0_5, %c0_6] : memref<32x2xf32, #tpu.memory_space<vmem>>, vector<32x2xf32>
    %10 = arith.truncf %8 : vector<2x32xf32> to vector<2x32xbf16>
    %11 = arith.truncf %9 : vector<32x2xf32> to vector<32x2xbf16>
    %cst_7 = arith.constant dense<0.000000e+00> : vector<2x2xf32>
    %12 = tpu.matmul %10, %11, %cst_7 {dimension_numbers = #tpu.dot_dimension_numbers<[1], [0], [0], [1], [0, 0, 1, 1], [], []>} : vector<2x32xbf16>, vector<32x2xbf16>, vector<2x2xf32> -> vector<2x2xf32>
    %c0_8 = arith.constant 0 : index
    %c0_9 = arith.constant 0 : index
    %13 = vector.load %arg5[%c0_8, %c0_9] : memref<1x2xf32, #tpu.memory_space<vmem>>, vector<1x2xf32>
    %14 = vector.broadcast %13 : vector<1x2xf32> to vector<2x2xf32>
    %15 = arith.addf %12, %14 : vector<2x2xf32>
    %c0_10 = arith.constant 0 : index
    %c0_11 = arith.constant 0 : index
    %16 = vector.load %arg6[%c0_10, %c0_11] : memref<2x2xf32, #tpu.memory_space<vmem>>, vector<2x2xf32>
    tpu.vector_store %arg6[%c0_10, %c0_11], %15 {strides = array<i32>} : memref<2x2xf32, #tpu.memory_space<vmem>>, vector<2x2xf32>,
    return
  }
  func.func @transform_0(%arg0: i32) -> (i32, i32) {
    %c0_i32 = arith.constant 0 : i32
    %c0_i32_0 = arith.constant 0 : i32
    %c0_i32_1 = arith.constant 0 : i32
    return %c0_i32, %c0_i32_0 : i32, i32
  }
  func.func @transform_1(%arg0: i32) -> (i32, i32) {
    %c0_i32 = arith.constant 0 : i32
    %c0_i32_0 = arith.constant 0 : i32
    %c0_i32_1 = arith.constant 0 : i32
    return %c0_i32, %c0_i32_0 : i32, i32
  }
  func.func @transform_2(%arg0: i32) -> (i32, i32) {
    %c0_i32 = arith.constant 0 : i32
    %c0_i32_0 = arith.constant 0 : i32
    %c0_i32_1 = arith.constant 0 : i32
    return %c0_i32, %c0_i32_0 : i32, i32
  }
  func.func @transform_3(%arg0: i32) -> (i32, i32) {
    %c0_i32 = arith.constant 0 : i32
    %c0_i32_0 = arith.constant 0 : i32
    %c0_i32_1 = arith.constant 0 : i32
    return %c0_i32, %c0_i32_0 : i32, i32
  }
  func.func @transform_4(%arg0: i32) -> (i32, i32) {
    %c0_i32 = arith.constant 0 : i32
    %c0_i32_0 = arith.constant 0 : i32
    %c0_i32_1 = arith.constant 0 : i32
    return %c0_i32, %c0_i32_0 : i32, i32
  }
  func.func @transform_5(%arg0: i32) -> (i32, i32) {
    %c0_i32 = arith.constant 0 : i32
    %c0_i32_0 = arith.constant 0 : i32
    %c0_i32_1 = arith.constant 0 : i32
    return %c0_i32, %c0_i32_0 : i32, i32
  }
}

</mosaic_0001>

<llo_original>
// kernel: plm_victim_forward.7
$region0: #{plm_victim_forward.7}
  #allocation0 [shape = 'u32[]', space=smem, size = 0x4, offset = 0x4, fixed_abs, tag = 'smem constant byte address 0x4 - core index']
  #allocation1 [shape = 'u32[144,128]{1,0:T(1,128)}', space=vmem, size = 0x12000, scoped, tag = 'internal scratch']
  %s0 = inlined_call_operand.vmem [shape: f32[2,32], index: 0, kind: input, shape index: {}]
  %s1 = inlined_call_operand.vmem [shape: f32[32,32], index: 1, kind: input, shape index: {}]
  %s2 = inlined_call_operand.vmem [shape: f32[1,32], index: 2, kind: input, shape index: {}]
  %s3 = inlined_call_operand.vmem [shape: f32[32,2], index: 3, kind: input, shape index: {}]
  %s4 = inlined_call_operand.vmem [shape: f32[1,2], index: 4, kind: input, shape index: {}]
  %s5 = inlined_call_operand.hbm [shape: f32[2,2], index: 5, kind: output, shape index: {}]
  %s6 = sld [smem:[#allocation0]]
  $region30: #{plm_victim_forward.7} parent=0
    _
  %s8 = ssub.s32 1, %s6
  %s9 = scalar_select 0, %s8, %s6
  $region1: #{plm_victim_forward.7} parent=0
    #allocation2 [shape = 'u8[1024]{0}', space=vmem, size = 0x400, scoped, tag = 'output window, operand 0, single buffered']
    #allocation3 [shape = 's32[1]{0}', space=sflag, size = 0x4, scoped, tag = 'scoped memory for plm_victim_forward.7']
    %10 = vsyncpa [#allocation3], 0
    // Predicated region
    $region2: #{plm_victim_forward.7} parent=1 // pred_check
      _
    $region3: #{plm_victim_forward.7} parent=1 // pred_check_branch
      %12 = sbr.rel (0) target = $region5
    $region4: #{plm_victim_forward.7} parent=1 // pred_region
      _
    $region5: #{plm_victim_forward.7} parent=1 // pred_fallthru
      _
    // Predicated region
    $region6: #{plm_victim_forward.7} parent=1 // pred_check
      _
    $region7: #{plm_victim_forward.7} parent=1 // pred_check_branch
      %14 = sbr.rel (0) target = $region9
    $region8: #{plm_victim_forward.7} parent=1 // pred_region
      _
    $region9: #{plm_victim_forward.7} parent=1 // pred_fallthru
      _
    // Predicated region
    $region10: #{plm_victim_forward.7} parent=1 // pred_check
      _
    $region11: #{plm_victim_forward.7} parent=1 // pred_check_branch
      %16 = sbr.rel (0) target = $region13
    $region12: #{plm_victim_forward.7} parent=1 // pred_region
      _
    $region13: #{plm_victim_forward.7} parent=1 // pred_fallthru
      _
    // Predicated region
    $region14: #{plm_victim_forward.7} parent=1 // pred_check
      _
    $region15: #{plm_victim_forward.7} parent=1 // pred_check_branch
      %18 = sbr.rel (0) target = $region17
    $region16: #{plm_victim_forward.7} parent=1 // pred_region
      _
    $region17: #{plm_victim_forward.7} parent=1 // pred_fallthru
      _
    // Predicated region
    $region18: #{plm_victim_forward.7} parent=1 // pred_check
      _
    $region19: #{plm_victim_forward.7} parent=1 // pred_check_branch
      %20 = sbr.rel (0) target = $region21
    $region20: #{plm_victim_forward.7} parent=1 // pred_region
      _
    $region21: #{plm_victim_forward.7} parent=1 // pred_fallthru
      _
    %v22 = vld [vmem:[%s0] sm:$0x3]
    %v23 = vld [vmem:[%s1] sm:$0xff]
    %v24 = vld [vmem:[%s1 + $0x8] sm:$0xff]
    %v25 = vld [vmem:[%s1 + $0x10] sm:$0xff]
    %v26 = vld [vmem:[%s1 + $0x18] sm:$0xff]
    %v27 = vpack.c.bf16 %v22, %v22
    %v28 = vpack.c.bf16 %v24, %v23
    %v29 = vpack.c.bf16 %v26, %v25
    %v30 = vld [vmem:[%s2] sm:$0x1]
    %v32 = vlaneseq
    %v33 = vshrl.u32 %v32, 7
    %v34 = vsub.s32 0, %v33
    %v35 = vrot.slane %v30, %v34
    %vm37 = vcmask 261120
    %v39 = vsel %vm37, %v27, 0
    %41 = vmatprep.subr.bf16.mxu0 0
    %42 = vmatpush1.bf16.msra.mxu0 %v28
    %43 = vmatprep.subr.bf16.mxu0 0
    %44 = vmatpush1.bf16.msra.mxu0 %v29
    %45 = vmatprep.subr.bf16.mxu0 0
    %46 = vmatpush1.bf16.msra.mxu0 0
    %47 = vmatprep.subr.bf16.mxu0 0
    %48 = vmatpush1.bf16.msra.mxu0 0
    %49 = vmatprep.subr.bf16.mxu0 0
    %50 = vmatpush1.bf16.msra.mxu0 0
    %51 = vmatprep.subr.bf16.mxu0 0
    %52 = vmatpush1.bf16.msra.mxu0 0
    %53 = vmatprep.subr.bf16.mxu0 0
    %54 = vmatpush1.bf16.msra.mxu0 0
    %55 = vmatprep.subr.bf16.mxu0 0
    %56 = vmatpush1.bf16.msra.mxu0 0
    %57 = vmatprep.subr.bf16.mxu0 0
    %58 = vmatpush1.bf16.msra.mxu0 0
    %59 = vmatprep.subr.bf16.mxu0 0
    %60 = vmatpush1.bf16.msra.mxu0 0
    %61 = vmatprep.subr.bf16.mxu0 0
    %62 = vmatpush1.bf16.msra.mxu0 0
    %63 = vmatprep.subr.bf16.mxu0 0
    %64 = vmatpush1.bf16.msra.mxu0 0
    %65 = vmatprep.subr.bf16.mxu0 0
    %66 = vmatpush1.bf16.msra.mxu0 0
    %67 = vmatprep.subr.bf16.mxu0 0
    %68 = vmatpush1.bf16.msra.mxu0 0
    %69 = vmatprep.subr.bf16.mxu0 0
    %70 = vmatpush1.bf16.msra.mxu0 0
    %71 = vmatprep.subr.bf16.mxu0 0
    %72 = vmatpush1.bf16.msra.mxu0 0
    %73 = vmatprep.mubr.bf16.mxu0 0
    %74 = vmatmul.mubr.bf16.gmra.mrb[0].mxu0 %v39
    %v75 = vpop.f32.mrb[0].mxu0
    %v76 = vadd.f32 %v35, %v75
    %v77 = vpop.f32.mrb[0].mxu0
    %v78 = vpop.f32.mrb[0].mxu0
    %v79 = vpop.f32.mrb[0].mxu0
    %80 = vdwg.mxu0
    %v81 = vtanh.pop %v76
    %v82 = vld [vmem:[%s3] sm:$0xff]
    %v83 = vld [vmem:[%s3 + $0x8] sm:$0xff]
    %v84 = vld [vmem:[%s3 + $0x10] sm:$0xff]
    %v85 = vld [vmem:[%s3 + $0x18] sm:$0xff]
    %v86 = vpack.c.bf16 %v81, %v81
    %v87 = vpack.c.bf16 %v83, %v82
    %v88 = vpack.c.bf16 %v85, %v84
    %v89 = vld [vmem:[%s4] sm:$0x1]
    %v91 = vlaneseq
    %v92 = vshrl.u32 %v91, 7
    %v93 = vsub.s32 0, %v92
    %v94 = vrot.slane %v89, %v93
    %v97 = vsel %vm37, %v86, 0
    %99 = vmatprep.subr.bf16.mxu0 0
    %100 = vmatpush1.bf16.msra.mxu0 %v87
    %101 = vmatprep.subr.bf16.mxu0 0
    %102 = vmatpush1.bf16.msra.mxu0 %v88
    %103 = vmatprep.subr.bf16.mxu0 0
    %104 = vmatpush1.bf16.msra.mxu0 0
    %105 = vmatprep.subr.bf16.mxu0 0
    %106 = vmatpush1.bf16.msra.mxu0 0
    %107 = vmatprep.subr.bf16.mxu0 0
    %108 = vmatpush1.bf16.msra.mxu0 0
    %109 = vmatprep.subr.bf16.mxu0 0
    %110 = vmatpush1.bf16.msra.mxu0 0
    %111 = vmatprep.subr.bf16.mxu0 0
    %112 = vmatpush1.bf16.msra.mxu0 0
    %113 = vmatprep.subr.bf16.mxu0 0
    %114 = vmatpush1.bf16.msra.mxu0 0
    %115 = vmatprep.subr.bf16.mxu0 0
    %116 = vmatpush1.bf16.msra.mxu0 0
    %117 = vmatprep.subr.bf16.mxu0 0
    %118 = vmatpush1.bf16.msra.mxu0 0
    %119 = vmatprep.subr.bf16.mxu0 0
    %120 = vmatpush1.bf16.msra.mxu0 0
    %121 = vmatprep.subr.bf16.mxu0 0
    %122 = vmatpush1.bf16.msra.mxu0 0
    %123 = vmatprep.subr.bf16.mxu0 0
    %124 = vmatpush1.bf16.msra.mxu0 0
    %125 = vmatprep.subr.bf16.mxu0 0
    %126 = vmatpush1.bf16.msra.mxu0 0
    %127 = vmatprep.subr.bf16.mxu0 0
    %128 = vmatpush1.bf16.msra.mxu0 0
    %129 = vmatprep.subr.bf16.mxu0 0
    %130 = vmatpush1.bf16.msra.mxu0 0
    %131 = vmatprep.mubr.bf16.mxu0 0
    %132 = vmatmul.mubr.bf16.gmra.mrb[0].mxu0 %v97
    %v133 = vpop.f32.mrb[0].mxu0
    %v134 = vadd.f32 %v94, %v133
    %v135 = vpop.f32.mrb[0].mxu0
    %v136 = vpop.f32.mrb[0].mxu0
    %v137 = vpop.f32.mrb[0].mxu0
    %138 = vdwg.mxu0
    %vm139 = vcmask 9216
    %140 = vst.msk [vmem:[#allocation2] sm:$0x3] %vm139, %v134
    // Predicated region
    $region22: #{plm_victim_forward.7} parent=1 // pred_check
      _
    $region23: #{plm_victim_forward.7} parent=1 // pred_check_branch
      %142 = sbr.rel (0) target = $region25
    $region24: #{plm_victim_forward.7} parent=1 // pred_region
      %s144 = ssub.s32 32, 32
      %145 = vsyncadd [#allocation3], %s144
      %s147 = sshll.u32 [#allocation2], 4
      %s148 = int_to_ptr.vmem [resolvable:$true] %s147
      %150 = dma.vmem_to_hbm [thread:$0]  %s148, 32, %s5, [#allocation3]
    $region25: #{plm_victim_forward.7} parent=1 // pred_fallthru
      _
    // Predicated region
    $region26: #{plm_victim_forward.7} parent=1 // pred_check
      _
    $region27: #{plm_victim_forward.7} parent=1 // pred_check_branch
      %152 = sbr.rel (0) target = $region29
    $region28: #{plm_victim_forward.7} parent=1 // pred_region
      %153 = dma.done [#allocation3], 32
    $region29: #{plm_victim_forward.7} parent=1 // pred_fallthru
      _
    %154 = vsyncpa [#allocation3], 1

// kernel: plm_victim_forward.4
$region0: #{plm_victim_forward.4}
  #allocation0 [shape = 'u32[]', space=smem, size = 0x4, offset = 0x4, fixed_abs, tag = 'smem constant byte address 0x4 - core index']
  #allocation1 [shape = 'u32[144,128]{1,0:T(1,128)}', space=vmem, size = 0x12000, scoped, tag = 'internal scratch']
  %s0 = inlined_call_operand.vmem [shape: f32[2,8,32], index: 0, kind: input, shape index: {}]
  %s1 = inlined_call_operand.vmem [shape: f32[1,8,32], index: 1, kind: input, shape index: {}]
  %s2 = inlined_call_operand.vmem [shape: f32[2,8,32], index: 2, kind: input, shape index: {}]
  %s3 = inlined_call_operand.vmem [shape: f32[1,32], index: 3, kind: input, shape index: {}]
  %s4 = inlined_call_operand.vmem [shape: f32[1,32], index: 4, kind: input, shape index: {}]
  %s5 = inlined_call_operand.vmem [shape: f32[2,8,32], index: 5, kind: output, shape index: {}]
  %s6 = sld [smem:[#allocation0]]
  $region53: #{plm_victim_forward.4} parent=0
    _
  %s8 = ssub.s32 1, %s6
  %s9 = scalar_select 0, %s8, %s6
  loop: start=0, step=1, limit=4
  $region2: #{plm_victim_forward.4} parent=0 // loop_pre_header
    _
  $region3: #{plm_victim_forward.4} parent=0 // loop_header
    %s11 = sphi 0, %s15
    %p12 = scmp.ge.s32.totalorder %s11, 4
    %s21 = sphi 0, %s23
    %s24 = sphi 0, %s21
    %s25 = sphi 0, %s24
    %s41 = sphi 0, %s25
    %s45 = sphi 0, %s45
    %s47 = sphi 0, %s45
    %s48 = sphi 0, %s47
    %s62 = sphi 0, %s48
    %s68 = sphi 0, %s70
    %s71 = sphi 0, %s68
    %s72 = sphi 0, %s71
    %s88 = sphi 0, %s72
    %s92 = sphi 0, %s92
    %s94 = sphi 0, %s92
    %s95 = sphi 0, %s94
    %s109 = sphi 0, %s95
    %s113 = sphi 0, %s113
    %s115 = sphi 0, %s113
    %s116 = sphi 0, %s115
    %s130 = sphi 0, %s116
    %s136 = sphi 0, %s138
    %s139 = sphi 0, %s136
    %s140 = sphi 0, %s139
    %s156 = sphi 0, %s140
  $region4: #{plm_victim_forward.4} parent=0 // loop_header_branch
    %14 = sbr.rel (%p12) target = $region8
  $region5: #{plm_victim_forward.4} parent=0 // loop_body
    %s16 = ssub.s32 %s11, 1
    %s17 = ssub.s32 %s11, 2
    %s18 = sadd.s32 %s11, 1
    %s19 = ssub.s32 %s11, %s18
    %p20 = scmp.eq.s32.totalorder %s19, 0
    %s22 = sadd.s32 %s21, 1
    %s23 = scalar_select %p20, %s21, %s22
    %p26 = pneg %p20
    %p27 = scmp.eq.s32.totalorder %s11, 1
    %p28 = por %p26, %p27
    %p29 = scmp.ne.s32.totalorder %s21, %s24
    %p30 = scmp.eq.s32.totalorder %s11, 0
    %p31 = por %p29, %p30
    %p32 = scmp.ne.s32.totalorder %s21, %s24
    %p33 = scmp.eq.s32.totalorder %s16, 1
    %p34 = por %p32, %p33
    %p35 = scmp.ne.s32.totalorder %s24, %s25
    %p36 = scmp.eq.s32.totalorder %s16, 0
    %p37 = por %p35, %p36
    %p38 = scmp.ne.s32.totalorder %s24, %s25
    %p39 = scmp.eq.s32.totalorder %s17, 1
    %p40 = por %p38, %p39
    %p42 = scmp.ne.s32.totalorder %s25, %s41
    %p43 = scmp.eq.s32.totalorder %s17, 0
    %p44 = por %p42, %p43
    %s46 = sadd.s32 %s45, 1
    %p49 = scmp.eq.s32.totalorder %s11, 1
    %p50 = scmp.ne.s32.totalorder %s45, %s47
    %p51 = scmp.eq.s32.totalorder %s11, 0
    %p52 = por %p50, %p51
    %p53 = scmp.ne.s32.totalorder %s45, %s47
    %p54 = scmp.eq.s32.totalorder %s16, 1
    %p55 = por %p53, %p54
    %p56 = scmp.ne.s32.totalorder %s47, %s48
    %p57 = scmp.eq.s32.totalorder %s16, 0
    %p58 = por %p56, %p57
    %p59 = scmp.ne.s32.totalorder %s47, %s48
    %p60 = scmp.eq.s32.totalorder %s17, 1
    %p61 = por %p59, %p60
    %p63 = scmp.ne.s32.totalorder %s48, %s62
    %p64 = scmp.eq.s32.totalorder %s17, 0
    %p65 = por %p63, %p64
    %s66 = ssub.s32 %s11, %s18
    %p67 = scmp.eq.s32.totalorder %s66, 0
    %s69 = sadd.s32 %s68, 1
    %s70 = scalar_select %p67, %s68, %s69
    %p73 = pneg %p67
    %p74 = scmp.eq.s32.totalorder %s11, 1
    %p75 = por %p73, %p74
    %p76 = scmp.ne.s32.totalorder %s68, %s71
    %p77 = scmp.eq.s32.totalorder %s11, 0
    %p78 = por %p76, %p77
    %p79 = scmp.ne.s32.totalorder %s68, %s71
    %p80 = scmp.eq.s32.totalorder %s16, 1
    %p81 = por %p79, %p80
    %p82 = scmp.ne.s32.totalorder %s71, %s72
    %p83 = scmp.eq.s32.totalorder %s16, 0
    %p84 = por %p82, %p83
    %p85 = scmp.ne.s32.totalorder %s71, %s72
    %p86 = scmp.eq.s32.totalorder %s17, 1
    %p87 = por %p85, %p86
    %p89 = scmp.ne.s32.totalorder %s72, %s88
    %p90 = scmp.eq.s32.totalorder %s17, 0
    %p91 = por %p89, %p90
    %s93 = sadd.s32 %s92, 1
    %p96 = scmp.eq.s32.totalorder %s11, 1
    %p97 = scmp.ne.s32.totalorder %s92, %s94
    %p98 = scmp.eq.s32.totalorder %s11, 0
    %p99 = por %p97, %p98
    %p100 = scmp.ne.s32.totalorder %s92, %s94
    %p101 = scmp.eq.s32.totalorder %s16, 1
    %p102 = por %p100, %p101
    %p103 = scmp.ne.s32.totalorder %s94, %s95
    %p104 = scmp.eq.s32.totalorder %s16, 0
    %p105 = por %p103, %p104
    %p106 = scmp.ne.s32.totalorder %s94, %s95
    %p107 = scmp.eq.s32.totalorder %s17, 1
    %p108 = por %p106, %p107
    %p110 = scmp.ne.s32.totalorder %s95, %s109
    %p111 = scmp.eq.s32.totalorder %s17, 0
    %p112 = por %p110, %p111
    %s114 = sadd.s32 %s113, 1
    %p117 = scmp.eq.s32.totalorder %s11, 1
    %p118 = scmp.ne.s32.totalorder %s113, %s115
    %p119 = scmp.eq.s32.totalorder %s11, 0
    %p120 = por %p118, %p119
    %p121 = scmp.ne.s32.totalorder %s113, %s115
    %p122 = scmp.eq.s32.totalorder %s16, 1
    %p123 = por %p121, %p122
    %p124 = scmp.ne.s32.totalorder %s115, %s116
    %p125 = scmp.eq.s32.totalorder %s16, 0
    %p126 = por %p124, %p125
    %p127 = scmp.ne.s32.totalorder %s115, %s116
    %p128 = scmp.eq.s32.totalorder %s17, 1
    %p129 = por %p127, %p128
    %p131 = scmp.ne.s32.totalorder %s116, %s130
    %p132 = scmp.eq.s32.totalorder %s17, 0
    %p133 = por %p131, %p132
    %s134 = ssub.s32 %s11, %s18
    %p135 = scmp.eq.s32.totalorder %s134, 0
    %s137 = sadd.s32 %s136, 1
    %s138 = scalar_select %p135, %s136, %s137
    %p141 = pneg %p135
    %p142 = scmp.eq.s32.totalorder %s11, 1
    %p143 = por %p141, %p142
    %p144 = scmp.ne.s32.totalorder %s136, %s139
    %p145 = scmp.eq.s32.totalorder %s11, 0
    %p146 = por %p144, %p145
    %p147 = scmp.ne.s32.totalorder %s136, %s139
    %p148 = scmp.eq.s32.totalorder %s16, 1
    %p149 = por %p147, %p148
    %p150 = scmp.ne.s32.totalorder %s139, %s140
    %p151 = scmp.eq.s32.totalorder %s16, 0
    %p152 = por %p150, %p151
    %p153 = scmp.ne.s32.totalorder %s139, %s140
    %p154 = scmp.eq.s32.totalorder %s17, 1
    %p155 = por %p153, %p154
    %p157 = scmp.ne.s32.totalorder %s140, %s156
    %p158 = scmp.eq.s32.totalorder %s17, 0
    %p159 = por %p157, %p158
    %p160 = scmp.le.s32.totalorder 1, %s11
    %p161 = scmp.lt.s32.totalorder %s11, 3
    %p162 = pnand %p160, %p161
    %p163 = pneg %p162
    // Predicated region
    $region9: #{plm_victim_forward.4} parent=5 // pred_check
      _
    $region10: #{plm_victim_forward.4} parent=5 // pred_check_branch
      %165 = sbr.rel (%p162) target = $region12
    $region11: #{plm_victim_forward.4} parent=5 // pred_region
      %s166 = ssub.s32 %s11, 1
      // Predicated region
      $region13: #{plm_victim_forward.4} parent=11 // pred_check
        %p167 = pneg %p58
      $region14: #{plm_victim_forward.4} parent=11 // pred_check_branch
        %169 = sbr.rel (%p167) target = $region16
      $region15: #{plm_victim_forward.4} parent=11 // pred_region
        _
      $region16: #{plm_victim_forward.4} parent=11 // pred_fallthru
        _
      // Predicated region
      $region17: #{plm_victim_forward.4} parent=11 // pred_check
        %p170 = pneg %p105
      $region18: #{plm_victim_forward.4} parent=11 // pred_check_branch
        %172 = sbr.rel (%p170) target = $region20
      $region19: #{plm_victim_forward.4} parent=11 // pred_region
        _
      $region20: #{plm_victim_forward.4} parent=11 // pred_fallthru
        _
      // Predicated region
      $region21: #{plm_victim_forward.4} parent=11 // pred_check
        %p173 = pneg %p126
      $region22: #{plm_victim_forward.4} parent=11 // pred_check_branch
        %175 = sbr.rel (%p173) target = $region24
      $region23: #{plm_victim_forward.4} parent=11 // pred_region
        _
      $region24: #{plm_victim_forward.4} parent=11 // pred_fallthru
        _
    $region12: #{plm_victim_forward.4} parent=5 // pred_fallthru
      _
    %p176 = scmp.lt.s32.totalorder %s11, 2
    // Predicated region
    $region25: #{plm_victim_forward.4} parent=5 // pred_check
      %p177 = pneg %p176
    $region26: #{plm_victim_forward.4} parent=5 // pred_check_branch
      %179 = sbr.rel (%p177) target = $region28
    $region27: #{plm_victim_forward.4} parent=5 // pred_region
      // Predicated region
      $region29: #{plm_victim_forward.4} parent=27 // pred_check
        %p180 = pneg %p31
      $region30: #{plm_victim_forward.4} parent=27 // pred_check_branch
        %182 = sbr.rel (%p180) target = $region32
      $region31: #{plm_victim_forward.4} parent=27 // pred_region
        %p183 = scmp.lt.s32.totalorder %s11, 1
        %s184 = scalar_select %p183, %s11, 1
        %s185 = smul.addr %s184, 8
        %s186 = scalar_lea.vmem %s0, %s185
      $region32: #{plm_victim_forward.4} parent=27 // pred_fallthru
        _
      // Predicated region
      $region33: #{plm_victim_forward.4} parent=27 // pred_check
        %p187 = pneg %p78
      $region34: #{plm_victim_forward.4} parent=27 // pred_check_branch
        %189 = sbr.rel (%p187) target = $region36
      $region35: #{plm_victim_forward.4} parent=27 // pred_region
        %p190 = scmp.lt.s32.totalorder %s11, 1
        %s191 = scalar_select %p190, %s11, 1
        %s192 = smul.addr %s191, 8
        %s193 = scalar_lea.vmem %s2, %s192
      $region36: #{plm_victim_forward.4} parent=27 // pred_fallthru
        _
    $region28: #{plm_victim_forward.4} parent=5 // pred_fallthru
      _
    %p194 = scmp.le.s32.totalorder 1, %s11
    %p195 = scmp.lt.s32.totalorder %s11, 3
    %p196 = pnand %p194, %p195
    %p197 = pneg %p196
    // Predicated region
    $region37: #{plm_victim_forward.4} parent=5 // pred_check
      _
    $region38: #{plm_victim_forward.4} parent=5 // pred_check_branch
      %199 = sbr.rel (%p196) target = $region40
    $region39: #{plm_victim_forward.4} parent=5 // pred_region
      %s200 = ssub.s32 %s11, 1
      %p201 = scmp.lt.s32.totalorder %s16, 1
      %s202 = scalar_select %p201, %s16, 1
      %s203 = smul.addr %s202, 8
      %s204 = scalar_lea.vmem %s0, %s203
      %p205 = pneg %p37
      %p206 = pneg %p34
      %p207 = pneg %p58
      %p208 = pneg %p55
      %p209 = scmp.lt.s32.totalorder %s16, 1
      %s210 = scalar_select %p209, %s16, 1
      %s211 = smul.addr %s210, 8
      %s212 = scalar_lea.vmem %s2, %s211
      %p213 = pneg %p84
      %p214 = pneg %p81
      %p215 = pneg %p105
      %p216 = pneg %p102
      %p217 = pneg %p126
      %p218 = pneg %p123
      %p219 = pneg %p152
      %p220 = pneg %p149
      %p221 = scmp.lt.s32.totalorder %s16, 1
      %s222 = scalar_select %p221, %s16, 1
      %s223 = smul.addr %s222, 8
      %s224 = scalar_lea.vmem %s5, %s223
      %p225 = scmp.lt.s32.totalorder %s16, 1
      %s226 = scalar_select %p225, %s16, 1
      %s227 = smul.addr %s226, 8
      %s228 = scalar_lea.vmem %s0, %s227
      %p229 = scmp.lt.s32.totalorder %s16, 1
      %s230 = scalar_select %p229, %s16, 1
      %s231 = smul.addr %s230, 8
      %s232 = scalar_lea.vmem %s2, %s231
      %p233 = scmp.lt.s32.totalorder %s16, 1
      %s234 = scalar_select %p233, %s16, 1
      %s235 = smul.addr %s234, 8
      %s236 = scalar_lea.vmem %s5, %s235
      %v237 = vld [vmem:[%s228] sm:$0xff]
      %v238 = vld [vmem:[%s1] sm:$0xff]
      %v239 = vadd.f32 %v237, %v238
      %v240 = vld [vmem:[%s232] sm:$0xff]
      %v241 = vadd.f32 %v239, %v240
      %v242 = vld [vmem:[%s3] sm:$0x1]
      %v243 = vld [vmem:[%s4] sm:$0x1]
      %vm244 = vcmask 261120
      %v245 = vsel %vm244, %v241, 0.0
      %246 = vadd.xlane.f32.xlu0 %v245
      %v247 = vpop.xlane.xlu0 %246
      %v248 = vrcp.pop 32.0
      %v249 = vmul.f32 %v247, %v248
      %v250 = vsub.f32 %v241, %v249
      %v251 = vmul.f32 %v250, %v250
      %v252 = vsel %vm244, %v251, 0.0
      %253 = vadd.xlane.f32.xlu0 %v252
      %v254 = vpop.xlane.xlu0 %253
      %v255 = vmul.f32 %v254, %v248
      %v256 = vadd.f32 %v255, 1e-12
      %v257 = vrsqrt.pop %v256
      %v258 = vmul.f32 %v250, %v257
      %v260 = vlaneseq
      %v261 = vshrl.u32 %v260, 7
      %v262 = vsub.s32 0, %v261
      %v263 = vrot.slane %v242, %v262
      %v265 = vmul.f32 %v258, %v263
      %v267 = vlaneseq
      %v268 = vshrl.u32 %v267, 7
      %v269 = vsub.s32 0, %v268
      %v270 = vrot.slane %v243, %v269
      %v272 = vadd.f32 %v265, %v270
      %273 = vst.msk [vmem:[%s236] sm:$0xff] %vm244, %v272
      %p274 = scmp.lt.s32.totalorder %s16, 1
      %s275 = scalar_select %p274, %s16, 1
      %s276 = smul.addr %s275, 8
      %s277 = scalar_lea.vmem %s5, %s276
      // Predicated region
      $region41: #{plm_victim_forward.4} parent=39 // pred_check
        %p278 = pneg %p149
      $region42: #{plm_victim_forward.4} parent=39 // pred_check_branch
        %280 = sbr.rel (%p278) target = $region44
      $region43: #{plm_victim_forward.4} parent=39 // pred_region
        _
      $region44: #{plm_victim_forward.4} parent=39 // pred_fallthru
        _
    $region40: #{plm_victim_forward.4} parent=5 // pred_fallthru
      _
    %p281 = scmp.le.s32.totalorder 2, %s11
    // Predicated region
    $region45: #{plm_victim_forward.4} parent=5 // pred_check
      %p282 = pneg %p281
    $region46: #{plm_victim_forward.4} parent=5 // pred_check_branch
      %284 = sbr.rel (%p282) target = $region48
    $region47: #{plm_victim_forward.4} parent=5 // pred_region
      %s285 = ssub.s32 %s11, 2
      // Predicated region
      $region49: #{plm_victim_forward.4} parent=47 // pred_check
        %p286 = pneg %p155
      $region50: #{plm_victim_forward.4} parent=47 // pred_check_branch
        %288 = sbr.rel (%p286) target = $region52
      $region51: #{plm_victim_forward.4} parent=47 // pred_region
        %p289 = scmp.lt.s32.totalorder %s17, 1
        %s290 = scalar_select %p289, %s17, 1
        %s291 = smul.addr %s290, 8
        %s292 = scalar_lea.vmem %s5, %s291
      $region52: #{plm_victim_forward.4} parent=47 // pred_fallthru
        _
    $region48: #{plm_victim_forward.4} parent=5 // pred_fallthru
      _
  $region6: #{plm_victim_forward.4} parent=0 // loop_footer
    %s15 = sadd.s32 1, %s11
  $region7: #{plm_victim_forward.4} parent=0 // loop_footer_branch
    %10 = sbr.rel target = $region3
  $region8: #{plm_victim_forward.4} parent=0 // loop_exit
    _

// kernel: plm_victim_forward.5
$region0: #{plm_victim_forward.5}
  #allocation0 [shape = 'u32[]', space=smem, size = 0x4, offset = 0x4, fixed_abs, tag = 'smem constant byte address 0x4 - core index']
  #allocation1 [shape = 'u32[144,128]{1,0:T(1,128)}', space=vmem, size = 0x12000, scoped, tag = 'internal scratch']
  %s0 = inlined_call_operand.vmem [shape: f32[2,8,32], index: 0, kind: input, shape index: {}]
  %s1 = inlined_call_operand.vmem [shape: f32[2,1,8], index: 1, kind: input, shape index: {}]
  %s2 = inlined_call_operand.vmem [shape: f32[32,96], index: 2, kind: input, shape index: {}]
  %s3 = inlined_call_operand.vmem [shape: f32[1,96], index: 3, kind: input, shape index: {}]
  %s4 = inlined_call_operand.vmem [shape: f32[32,32], index: 4, kind: input, shape index: {}]
  %s5 = inlined_call_operand.vmem [shape: f32[1,32], index: 5, kind: input, shape index: {}]
  %s6 = inlined_call_operand.vmem [shape: f32[1,32], index: 6, kind: input, shape index: {}]
  %s7 = inlined_call_operand.vmem [shape: f32[1,32], index: 7, kind: input, shape index: {}]
  %s8 = inlined_call_operand.vmem [shape: f32[32,64], index: 8, kind: input, shape index: {}]
  %s9 = inlined_call_operand.vmem [shape: f32[1,64], index: 9, kind: input, shape index: {}]
  %s10 = inlined_call_operand.vmem [shape: f32[64,32], index: 10, kind: input, shape index: {}]
  %s11 = inlined_call_operand.vmem [shape: f32[1,32], index: 11, kind: input, shape index: {}]
  %s12 = inlined_call_operand.vmem [shape: f32[1,32], index: 12, kind: input, shape index: {}]
  %s13 = inlined_call_operand.vmem [shape: f32[1,32], index: 13, kind: input, shape index: {}]
  %s14 = inlined_call_operand.vmem [shape: f32[2,8,32], index: 14, kind: output, shape index: {}]
  %s15 = sld [smem:[#allocation0]]
  $region89: #{plm_victim_forward.5} parent=0
    _
  %s17 = ssub.s32 1, %s15
  %s18 = scalar_select 0, %s17, %s15
  loop: start=0, step=1, limit=4
  $region2: #{plm_victim_forward.5} parent=0 // loop_pre_header
    _
  $region3: #{plm_victim_forward.5} parent=0 // loop_header
    %s20 = sphi 0, %s24
    %p21 = scmp.ge.s32.totalorder %s20, 4
    %s30 = sphi 0, %s32
    %s33 = sphi 0, %s30
    %s34 = sphi 0, %s33
    %s50 = sphi 0, %s34
    %s56 = sphi 0, %s58
    %s59 = sphi 0, %s56
    %s60 = sphi 0, %s59
    %s76 = sphi 0, %s60
    %s80 = sphi 0, %s80
    %s82 = sphi 0, %s80
    %s83 = sphi 0, %s82
    %s97 = sphi 0, %s83
    %s101 = sphi 0, %s101
    %s103 = sphi 0, %s101
    %s104 = sphi 0, %s103
    %s118 = sphi 0, %s104
    %s122 = sphi 0, %s122
    %s124 = sphi 0, %s122
    %s125 = sphi 0, %s124
    %s139 = sphi 0, %s125
    %s143 = sphi 0, %s143
    %s145 = sphi 0, %s143
    %s146 = sphi 0, %s145
    %s160 = sphi 0, %s146
    %s164 = sphi 0, %s164
    %s166 = sphi 0, %s164
    %s167 = sphi 0, %s166
    %s181 = sphi 0, %s167
    %s185 = sphi 0, %s185
    %s187 = sphi 0, %s185
    %s188 = sphi 0, %s187
    %s202 = sphi 0, %s188
    %s206 = sphi 0, %s206
    %s208 = sphi 0, %s206
    %s209 = sphi 0, %s208
    %s223 = sphi 0, %s209
    %s227 = sphi 0, %s227
    %s229 = sphi 0, %s227
    %s230 = sphi 0, %s229
    %s244 = sphi 0, %s230
    %s248 = sphi 0, %s248
    %s250 = sphi 0, %s248
    %s251 = sphi 0, %s250
    %s265 = sphi 0, %s251
    %s269 = sphi 0, %s269
    %s271 = sphi 0, %s269
    %s272 = sphi 0, %s271
    %s286 = sphi 0, %s272
    %s290 = sphi 0, %s290
    %s292 = sphi 0, %s290
    %s293 = sphi 0, %s292
    %s307 = sphi 0, %s293
    %s311 = sphi 0, %s311
    %s313 = sphi 0, %s311
    %s314 = sphi 0, %s313
    %s328 = sphi 0, %s314
    %s334 = sphi 0, %s336
    %s337 = sphi 0, %s334
    %s338 = sphi 0, %s337
    %s354 = sphi 0, %s338
  $region4: #{plm_victim_forward.5} parent=0 // loop_header_branch
    %23 = sbr.rel (%p21) target = $region8
  $region5: #{plm_victim_forward.5} parent=0 // loop_body
    %s25 = ssub.s32 %s20, 1
    %s26 = ssub.s32 %s20, 2
    %s27 = sadd.s32 %s20, 1
    %s28 = ssub.s32 %s20, %s27
    %p29 = scmp.eq.s32.totalorder %s28, 0
    %s31 = sadd.s32 %s30, 1
    %s32 = scalar_select %p29, %s30, %s31
    %p35 = pneg %p29
    %p36 = scmp.eq.s32.totalorder %s20, 1
    %p37 = por %p35, %p36
    %p38 = scmp.ne.s32.totalorder %s30, %s33
    %p39 = scmp.eq.s32.totalorder %s20, 0
    %p40 = por %p38, %p39
    %p41 = scmp.ne.s32.totalorder %s30, %s33
    %p42 = scmp.eq.s32.totalorder %s25, 1
    %p43 = por %p41, %p42
    %p44 = scmp.ne.s32.totalorder %s33, %s34
    %p45 = scmp.eq.s32.totalorder %s25, 0
    %p46 = por %p44, %p45
    %p47 = scmp.ne.s32.totalorder %s33, %s34
    %p48 = scmp.eq.s32.totalorder %s26, 1
    %p49 = por %p47, %p48
    %p51 = scmp.ne.s32.totalorder %s34, %s50
    %p52 = scmp.eq.s32.totalorder %s26, 0
    %p53 = por %p51, %p52
    %s54 = ssub.s32 %s20, %s27
    %p55 = scmp.eq.s32.totalorder %s54, 0
    %s57 = sadd.s32 %s56, 1
    %s58 = scalar_select %p55, %s56, %s57
    %p61 = pneg %p55
    %p62 = scmp.eq.s32.totalorder %s20, 1
    %p63 = por %p61, %p62
    %p64 = scmp.ne.s32.totalorder %s56, %s59
    %p65 = scmp.eq.s32.totalorder %s20, 0
    %p66 = por %p64, %p65
    %p67 = scmp.ne.s32.totalorder %s56, %s59
    %p68 = scmp.eq.s32.totalorder %s25, 1
    %p69 = por %p67, %p68
    %p70 = scmp.ne.s32.totalorder %s59, %s60
    %p71 = scmp.eq.s32.totalorder %s25, 0
    %p72 = por %p70, %p71
    %p73 = scmp.ne.s32.totalorder %s59, %s60
    %p74 = scmp.eq.s32.totalorder %s26, 1
    %p75 = por %p73, %p74
    %p77 = scmp.ne.s32.totalorder %s60, %s76
    %p78 = scmp.eq.s32.totalorder %s26, 0
    %p79 = por %p77, %p78
    %s81 = sadd.s32 %s80, 1
    %p84 = scmp.eq.s32.totalorder %s20, 1
    %p85 = scmp.ne.s32.totalorder %s80, %s82
    %p86 = scmp.eq.s32.totalorder %s20, 0
    %p87 = por %p85, %p86
    %p88 = scmp.ne.s32.totalorder %s80, %s82
    %p89 = scmp.eq.s32.totalorder %s25, 1
    %p90 = por %p88, %p89
    %p91 = scmp.ne.s32.totalorder %s82, %s83
    %p92 = scmp.eq.s32.totalorder %s25, 0
    %p93 = por %p91, %p92
    %p94 = scmp.ne.s32.totalorder %s82, %s83
    %p95 = scmp.eq.s32.totalorder %s26, 1
    %p96 = por %p94, %p95
    %p98 = scmp.ne.s32.totalorder %s83, %s97
    %p99 = scmp.eq.s32.totalorder %s26, 0
    %p100 = por %p98, %p99
    %s102 = sadd.s32 %s101, 1
    %p105 = scmp.eq.s32.totalorder %s20, 1
    %p106 = scmp.ne.s32.totalorder %s101, %s103
    %p107 = scmp.eq.s32.totalorder %s20, 0
    %p108 = por %p106, %p107
    %p109 = scmp.ne.s32.totalorder %s101, %s103
    %p110 = scmp.eq.s32.totalorder %s25, 1
    %p111 = por %p109, %p110
    %p112 = scmp.ne.s32.totalorder %s103, %s104
    %p113 = scmp.eq.s32.totalorder %s25, 0
    %p114 = por %p112, %p113
    %p115 = scmp.ne.s32.totalorder %s103, %s104
    %p116 = scmp.eq.s32.totalorder %s26, 1
    %p117 = por %p115, %p116
    %p119 = scmp.ne.s32.totalorder %s104, %s118
    %p120 = scmp.eq.s32.totalorder %s26, 0
    %p121 = por %p119, %p120
    %s123 = sadd.s32 %s122, 1
    %p126 = scmp.eq.s32.totalorder %s20, 1
    %p127 = scmp.ne.s32.totalorder %s122, %s124
    %p128 = scmp.eq.s32.totalorder %s20, 0
    %p129 = por %p127, %p128
    %p130 = scmp.ne.s32.totalorder %s122, %s124
    %p131 = scmp.eq.s32.totalorder %s25, 1
    %p132 = por %p130, %p131
    %p133 = scmp.ne.s32.totalorder %s124, %s125
    %p134 = scmp.eq.s32.totalorder %s25, 0
    %p135 = por %p133, %p134
    %p136 = scmp.ne.s32.totalorder %s124, %s125
    %p137 = scmp.eq.s32.totalorder %s26, 1
    %p138 = por %p136, %p137
    %p140 = scmp.ne.s32.totalorder %s125, %s139
    %p141 = scmp.eq.s32.totalorder %s26, 0
    %p142 = por %p140, %p141
    %s144 = sadd.s32 %s143, 1
    %p147 = scmp.eq.s32.totalorder %s20, 1
    %p148 = scmp.ne.s32.totalorder %s143, %s145
    %p149 = scmp.eq.s32.totalorder %s20, 0
    %p150 = por %p148, %p149
    %p151 = scmp.ne.s32.totalorder %s143, %s145
    %p152 = scmp.eq.s32.totalorder %s25, 1
    %p153 = por %p151, %p152
    %p154 = scmp.ne.s32.totalorder %s145, %s146
    %p155 = scmp.eq.s32.totalorder %s25, 0
    %p156 = por %p154, %p155
    %p157 = scmp.ne.s32.totalorder %s145, %s146
    %p158 = scmp.eq.s32.totalorder %s26, 1
    %p159 = por %p157, %p158
    %p161 = scmp.ne.s32.totalorder %s146, %s160
    %p162 = scmp.eq.s32.totalorder %s26, 0
    %p163 = por %p161, %p162
    %s165 = sadd.s32 %s164, 1
    %p168 = scmp.eq.s32.totalorder %s20, 1
    %p169 = scmp.ne.s32.totalorder %s164, %s166
    %p170 = scmp.eq.s32.totalorder %s20, 0
    %p171 = por %p169, %p170
    %p172 = scmp.ne.s32.totalorder %s164, %s166
    %p173 = scmp.eq.s32.totalorder %s25, 1
    %p174 = por %p172, %p173
    %p175 = scmp.ne.s32.totalorder %s166, %s167
    %p176 = scmp.eq.s32.totalorder %s25, 0
    %p177 = por %p175, %p176
    %p178 = scmp.ne.s32.totalorder %s166, %s167
    %p179 = scmp.eq.s32.totalorder %s26, 1
    %p180 = por %p178, %p179
    %p182 = scmp.ne.s32.totalorder %s167, %s181
    %p183 = scmp.eq.s32.totalorder %s26, 0
    %p184 = por %p182, %p183
    %s186 = sadd.s32 %s185, 1
    %p189 = scmp.eq.s32.totalorder %s20, 1
    %p190 = scmp.ne.s32.totalorder %s185, %s187
    %p191 = scmp.eq.s32.totalorder %s20, 0
    %p192 = por %p190, %p191
    %p193 = scmp.ne.s32.totalorder %s185, %s187
    %p194 = scmp.eq.s32.totalorder %s25, 1
    %p195 = por %p193, %p194
    %p196 = scmp.ne.s32.totalorder %s187, %s188
    %p197 = scmp.eq.s32.totalorder %s25, 0
    %p198 = por %p196, %p197
    %p199 = scmp.ne.s32.totalorder %s187, %s188
    %p200 = scmp.eq.s32.totalorder %s26, 1
    %p201 = por %p199, %p200
    %p203 = scmp.ne.s32.totalorder %s188, %s202
    %p204 = scmp.eq.s32.totalorder %s26, 0
    %p205 = por %p203, %p204
    %s207 = sadd.s32 %s206, 1
    %p210 = scmp.eq.s32.totalorder %s20, 1
    %p211 = scmp.ne.s32.totalorder %s206, %s208
    %p212 = scmp.eq.s32.totalorder %s20, 0
    %p213 = por %p211, %p212
    %p214 = scmp.ne.s32.totalorder %s206, %s208
    %p215 = scmp.eq.s32.totalorder %s25, 1
    %p216 = por %p214, %p215
    %p217 = scmp.ne.s32.totalorder %s208, %s209
    %p218 = scmp.eq.s32.totalorder %s25, 0
    %p219 = por %p217, %p218
    %p220 = scmp.ne.s32.totalorder %s208, %s209
    %p221 = scmp.eq.s32.totalorder %s26, 1
    %p222 = por %p220, %p221
    %p224 = scmp.ne.s32.totalorder %s209, %s223
    %p225 = scmp.eq.s32.totalorder %s26, 0
    %p226 = por %p224, %p225
    %s228 = sadd.s32 %s227, 1
    %p231 = scmp.eq.s32.totalorder %s20, 1
    %p232 = scmp.ne.s32.totalorder %s227, %s229
    %p233 = scmp.eq.s32.totalorder %s20, 0
    %p234 = por %p232, %p233
    %p235 = scmp.ne.s32.totalorder %s227, %s229
    %p236 = scmp.eq.s32.totalorder %s25, 1
    %p237 = por %p235, %p236
    %p238 = scmp.ne.s32.totalorder %s229, %s230
    %p239 = scmp.eq.s32.totalorder %s25, 0
    %p240 = por %p238, %p239
    %p241 = scmp.ne.s32.totalorder %s229, %s230
    %p242 = scmp.eq.s32.totalorder %s26, 1
    %p243 = por %p241, %p242
    %p245 = scmp.ne.s32.totalorder %s230, %s244
    %p246 = scmp.eq.s32.totalorder %s26, 0
    %p247 = por %p245, %p246
    %s249 = sadd.s32 %s248, 1
    %p252 = scmp.eq.s32.totalorder %s20, 1
    %p253 = scmp.ne.s32.totalorder %s248, %s250
    %p254 = scmp.eq.s32.totalorder %s20, 0
    %p255 = por %p253, %p254
    %p256 = scmp.ne.s32.totalorder %s248, %s250
    %p257 = scmp.eq.s32.totalorder %s25, 1
    %p258 = por %p256, %p257
    %p259 = scmp.ne.s32.totalorder %s250, %s251
    %p260 = scmp.eq.s32.totalorder %s25, 0
    %p261 = por %p259, %p260
    %p262 = scmp.ne.s32.totalorder %s250, %s251
    %p263 = scmp.eq.s32.totalorder %s26, 1
    %p264 = por %p262, %p263
    %p266 = scmp.ne.s32.totalorder %s251, %s265
    %p267 = scmp.eq.s32.totalorder %s26, 0
    %p268 = por %p266, %p267
    %s270 = sadd.s32 %s269, 1
    %p273 = scmp.eq.s32.totalorder %s20, 1
    %p274 = scmp.ne.s32.totalorder %s269, %s271
    %p275 = scmp.eq.s32.totalorder %s20, 0
    %p276 = por %p274, %p275
    %p277 = scmp.ne.s32.totalorder %s269, %s271
    %p278 = scmp.eq.s32.totalorder %s25, 1
    %p279 = por %p277, %p278
    %p280 = scmp.ne.s32.totalorder %s271, %s272
    %p281 = scmp.eq.s32.totalorder %s25, 0
    %p282 = por %p280, %p281
    %p283 = scmp.ne.s32.totalorder %s271, %s272
    %p284 = scmp.eq.s32.totalorder %s26, 1
    %p285 = por %p283, %p284
    %p287 = scmp.ne.s32.totalorder %s272, %s286
    %p288 = scmp.eq.s32.totalorder %s26, 0
    %p289 = por %p287, %p288
    %s291 = sadd.s32 %s290, 1
    %p294 = scmp.eq.s32.totalorder %s20, 1
    %p295 = scmp.ne.s32.totalorder %s290, %s292
    %p296 = scmp.eq.s32.totalorder %s20, 0
    %p297 = por %p295, %p296
    %p298 = scmp.ne.s32.totalorder %s290, %s292
    %p299 = scmp.eq.s32.totalorder %s25, 1
    %p300 = por %p298, %p299
    %p301 = scmp.ne.s32.totalorder %s292, %s293
    %p302 = scmp.eq.s32.totalorder %s25, 0
    %p303 = por %p301, %p302
    %p304 = scmp.ne.s32.totalorder %s292, %s293
    %p305 = scmp.eq.s32.totalorder %s26, 1
    %p306 = por %p304, %p305
    %p308 = scmp.ne.s32.totalorder %s293, %s307
    %p309 = scmp.eq.s32.totalorder %s26, 0
    %p310 = por %p308, %p309
    %s312 = sadd.s32 %s311, 1
    %p315 = scmp.eq.s32.totalorder %s20, 1
    %p316 = scmp.ne.s32.totalorder %s311, %s313
    %p317 = scmp.eq.s32.totalorder %s20, 0
    %p318 = por %p316, %p317
    %p319 = scmp.ne.s32.totalorder %s311, %s313
    %p320 = scmp.eq.s32.totalorder %s25, 1
    %p321 = por %p319, %p320
    %p322 = scmp.ne.s32.totalorder %s313, %s314
    %p323 = scmp.eq.s32.totalorder %s25, 0
    %p324 = por %p322, %p323
    %p325 = scmp.ne.s32.totalorder %s313, %s314
    %p326 = scmp.eq.s32.totalorder %s26, 1
    %p327 = por %p325, %p326
    %p329 = scmp.ne.s32.totalorder %s314, %s328
    %p330 = scmp.eq.s32.totalorder %s26, 0
    %p331 = por %p329, %p330
    %s332 = ssub.s32 %s20, %s27
    %p333 = scmp.eq.s32.totalorder %s332, 0
    %s335 = sadd.s32 %s334, 1
    %s336 = scalar_select %p333, %s334, %s335
    %p339 = pneg %p333
    %p340 = scmp.eq.s32.totalorder %s20, 1
    %p341 = por %p339, %p340
    %p342 = scmp.ne.s32.totalorder %s334, %s337
    %p343 = scmp.eq.s32.totalorder %s20, 0
    %p344 = por %p342, %p343
    %p345 = scmp.ne.s32.totalorder %s334, %s337
    %p346 = scmp.eq.s32.totalorder %s25, 1
    %p347 = por %p345, %p346
    %p348 = scmp.ne.s32.totalorder %s337, %s338
    %p349 = scmp.eq.s32.totalorder %s25, 0
    %p350 = por %p348, %p349
    %p351 = scmp.ne.s32.totalorder %s337, %s338
    %p352 = scmp.eq.s32.totalorder %s26, 1
    %p353 = por %p351, %p352
    %p355 = scmp.ne.s32.totalorder %s338, %s354
    %p356 = scmp.eq.s32.totalorder %s26, 0
    %p357 = por %p355, %p356
    %p358 = scmp.le.s32.totalorder 1, %s20
    %p359 = scmp.lt.s32.totalorder %s20, 3
    %p360 = pnand %p358, %p359
    %p361 = pneg %p360
    // Predicated region
    $region9: #{plm_victim_forward.5} parent=5 // pred_check
      _
    $region10: #{plm_victim_forward.5} parent=5 // pred_check_branch
      %363 = sbr.rel (%p360) target = $region12
    $region11: #{plm_victim_forward.5} parent=5 // pred_region
      %s364 = ssub.s32 %s20, 1
      // Predicated region
      $region13: #{plm_victim_forward.5} parent=11 // pred_check
        %p365 = pneg %p93
      $region14: #{plm_victim_forward.5} parent=11 // pred_check_branch
        %367 = sbr.rel (%p365) target = $region16
      $region15: #{plm_victim_forward.5} parent=11 // pred_region
        _
      $region16: #{plm_victim_forward.5} parent=11 // pred_fallthru
        _
      // Predicated region
      $region17: #{plm_victim_forward.5} parent=11 // pred_check
        %p368 = pneg %p114
      $region18: #{plm_victim_forward.5} parent=11 // pred_check_branch
        %370 = sbr.rel (%p368) target = $region20
      $region19: #{plm_victim_forward.5} parent=11 // pred_region
        _
      $region20: #{plm_victim_forward.5} parent=11 // pred_fallthru
        _
      // Predicated region
      $region21: #{plm_victim_forward.5} parent=11 // pred_check
        %p371 = pneg %p135
      $region22: #{plm_victim_forward.5} parent=11 // pred_check_branch
        %373 = sbr.rel (%p371) target = $region24
      $region23: #{plm_victim_forward.5} parent=11 // pred_region
        _
      $region24: #{plm_victim_forward.5} parent=11 // pred_fallthru
        _
      // Predicated region
      $region25: #{plm_victim_forward.5} parent=11 // pred_check
        %p374 = pneg %p156
      $region26: #{plm_victim_forward.5} parent=11 // pred_check_branch
        %376 = sbr.rel (%p374) target = $region28
      $region27: #{plm_victim_forward.5} parent=11 // pred_region
        _
      $region28: #{plm_victim_forward.5} parent=11 // pred_fallthru
        _
      // Predicated region
      $region29: #{plm_victim_forward.5} parent=11 // pred_check
        %p377 = pneg %p177
      $region30: #{plm_victim_forward.5} parent=11 // pred_check_branch
        %379 = sbr.rel (%p377) target = $region32
      $region31: #{plm_victim_forward.5} parent=11 // pred_region
        _
      $region32: #{plm_victim_forward.5} parent=11 // pred_fallthru
        _
      // Predicated region
      $region33: #{plm_victim_forward.5} parent=11 // pred_check
        %p380 = pneg %p198
      $region34: #{plm_victim_forward.5} parent=11 // pred_check_branch
        %382 = sbr.rel (%p380) target = $region36
      $region35: #{plm_victim_forward.5} parent=11 // pred_region
        _
      $region36: #{plm_victim_forward.5} parent=11 // pred_fallthru
        _
      // Predicated region
      $region37: #{plm_victim_forward.5} parent=11 // pred_check
        %p383 = pneg %p219
      $region38: #{plm_victim_forward.5} parent=11 // pred_check_branch
        %385 = sbr.rel (%p383) target = $region40
      $region39: #{plm_victim_forward.5} parent=11 // pred_region
        _
      $region40: #{plm_victim_forward.5} parent=11 // pred_fallthru
        _
      // Predicated region
      $region41: #{plm_victim_forward.5} parent=11 // pred_check
        %p386 = pneg %p240
      $region42: #{plm_victim_forward.5} parent=11 // pred_check_branch
        %388 = sbr.rel (%p386) target = $region44
      $region43: #{plm_victim_forward.5} parent=11 // pred_region
        _
      $region44: #{plm_victim_forward.5} parent=11 // pred_fallthru
        _
      // Predicated region
      $region45: #{plm_victim_forward.5} parent=11 // pred_check
        %p389 = pneg %p261
      $region46: #{plm_victim_forward.5} parent=11 // pred_check_branch
        %391 = sbr.rel (%p389) target = $region48
      $region47: #{plm_victim_forward.5} parent=11 // pred_region
        _
      $region48: #{plm_victim_forward.5} parent=11 // pred_fallthru
        _
      // Predicated region
      $region49: #{plm_victim_forward.5} parent=11 // pred_check
        %p392 = pneg %p282
      $region50: #{plm_victim_forward.5} parent=11 // pred_check_branch
        %394 = sbr.rel (%p392) target = $region52
      $region51: #{plm_victim_forward.5} parent=11 // pred_region
        _
      $region52: #{plm_victim_forward.5} parent=11 // pred_fallthru
        _
      // Predicated region
      $region53: #{plm_victim_forward.5} parent=11 // pred_check
        %p395 = pneg %p303
      $region54: #{plm_victim_forward.5} parent=11 // pred_check_branch
        %397 = sbr.rel (%p395) target = $region56
      $region55: #{plm_victim_forward.5} parent=11 // pred_region
        _
      $region56: #{plm_victim_forward.5} parent=11 // pred_fallthru
        _
      // Predicated region
      $region57: #{plm_victim_forward.5} parent=11 // pred_check
        %p398 = pneg %p324
      $region58: #{plm_victim_forward.5} parent=11 // pred_check_branch
        %400 = sbr.rel (%p398) target = $region60
      $region59: #{plm_victim_forward.5} parent=11 // pred_region
        _
      $region60: #{plm_victim_forward.5} parent=11 // pred_fallthru
        _
    $region12: #{plm_victim_forward.5} parent=5 // pred_fallthru
      _
    %p401 = scmp.lt.s32.totalorder %s20, 2
    // Predicated region
    $region61: #{plm_victim_forward.5} parent=5 // pred_check
      %p402 = pneg %p401
    $region62: #{plm_victim_forward.5} parent=5 // pred_check_branch
      %404 = sbr.rel (%p402) target = $region64
    $region63: #{plm_victim_forward.5} parent=5 // pred_region
      // Predicated region
      $region65: #{plm_victim_forward.5} parent=63 // pred_check
        %p405 = pneg %p40
      $region66: #{plm_victim_forward.5} parent=63 // pred_check_branch
        %407 = sbr.rel (%p405) target = $region68
      $region67: #{plm_victim_forward.5} parent=63 // pred_region
        %p408 = scmp.lt.s32.totalorder %s20, 1
        %s409 = scalar_select %p408, %s20, 1
        %s410 = smul.addr %s409, 8
        %s411 = scalar_lea.vmem %s0, %s410
      $region68: #{plm_victim_forward.5} parent=63 // pred_fallthru
        _
      // Predicated region
      $region69: #{plm_victim_forward.5} parent=63 // pred_check
        %p412 = pneg %p66
      $region70: #{plm_victim_forward.5} parent=63 // pred_check_branch
        %414 = sbr.rel (%p412) target = $region72
      $region71: #{plm_victim_forward.5} parent=63 // pred_region
        %p415 = scmp.lt.s32.totalorder %s20, 1
        %s416 = scalar_select %p415, %s20, 1
        %s417 = scalar_lea.vmem %s1, %s416
      $region72: #{plm_victim_forward.5} parent=63 // pred_fallthru
        _
    $region64: #{plm_victim_forward.5} parent=5 // pred_fallthru
      _
    %p418 = scmp.le.s32.totalorder 1, %s20
    %p419 = scmp.lt.s32.totalorder %s20, 3
    %p420 = pnand %p418, %p419
    %p421 = pneg %p420
    // Predicated region
    $region73: #{plm_victim_forward.5} parent=5 // pred_check
      _
    $region74: #{plm_victim_forward.5} parent=5 // pred_check_branch
      %423 = sbr.rel (%p420) target = $region76
    $region75: #{plm_victim_forward.5} parent=5 // pred_region
      %s424 = ssub.s32 %s20, 1
      %p425 = scmp.lt.s32.totalorder %s25, 1
      %s426 = scalar_select %p425, %s25, 1
      %s427 = smul.addr %s426, 8
      %s428 = scalar_lea.vmem %s0, %s427
      %p429 = pneg %p46
      %p430 = pneg %p43
      %p431 = scmp.lt.s32.totalorder %s25, 1
      %s432 = scalar_select %p431, %s25, 1
      %s433 = scalar_lea.vmem %s1, %s432
      %p434 = pneg %p72
      %p435 = pneg %p69
      %p436 = pneg %p93
      %p437 = pneg %p90
      %p438 = pneg %p114
      %p439 = pneg %p111
      %p440 = pneg %p135
      %p441 = pneg %p132
      %p442 = pneg %p156
      %p443 = pneg %p153
      %p444 = pneg %p177
      %p445 = pneg %p174
      %p446 = pneg %p198
      %p447 = pneg %p195
      %p448 = pneg %p219
      %p449 = pneg %p216
      %p450 = pneg %p240
      %p451 = pneg %p237
      %p452 = pneg %p261
      %p453 = pneg %p258
      %p454 = pneg %p282
      %p455 = pneg %p279
      %p456 = pneg %p303
      %p457 = pneg %p300
      %p458 = pneg %p324
      %p459 = pneg %p321
      %p460 = pneg %p350
      %p461 = pneg %p347
      %p462 = scmp.lt.s32.totalorder %s25, 1
      %s463 = scalar_select %p462, %s25, 1
      %s464 = smul.addr %s463, 8
      %s465 = scalar_lea.vmem %s14, %s464
      %p466 = scmp.lt.s32.totalorder %s25, 1
      %s467 = scalar_select %p466, %s25, 1
      %s468 = smul.addr %s467, 8
      %s469 = scalar_lea.vmem %s0, %s468
      %p470 = scmp.lt.s32.totalorder %s25, 1
      %s471 = scalar_select %p470, %s25, 1
      %s472 = scalar_lea.vmem %s1, %s471
      %p473 = scmp.lt.s32.totalorder %s25, 1
      %s474 = scalar_select %p473, %s25, 1
      %s475 = smul.addr %s474, 8
      %s476 = scalar_lea.vmem %s14, %s475
      %v478 = vld [vmem:[%s469] sm:$0xff]
      %v479 = vld [vmem:[%s472] sm:$0x1]
      %v480 = vld [vmem:[%s2] sm:$0xff]
      %v481 = vld [vmem:[%s2 + $0x8] sm:$0xff]
      %v482 = vld [vmem:[%s2 + $0x10] sm:$0xff]
      %v483 = vld [vmem:[%s2 + $0x18] sm:$0xff]
      %v484 = vpack.c.bf16 %v478, %v478
      %v485 = vpack.c.bf16 %v481, %v480
      %v486 = vpack.c.bf16 %v483, %v482
      %v487 = vld [vmem:[%s3] sm:$0x1]
      %v489 = vlaneseq
      %v490 = vshrl.u32 %v489, 7
      %v491 = vsub.s32 0, %v490
      %v492 = vrot.slane %v487, %v491
      %vm494 = vcmask 261120
      %v496 = vsel %vm494, %v484, 0
      %498 = vmatprep.subr.bf16.mxu0 0
      %499 = vmatpush1.bf16.msra.mxu0 %v485
      %500 = vmatprep.subr.bf16.mxu0 0
      %501 = vmatpush1.bf16.msra.mxu0 %v486
      %502 = vmatprep.subr.bf16.mxu0 0
      %503 = vmatpush1.bf16.msra.mxu0 0
      %504 = vmatprep.subr.bf16.mxu0 0
      %505 = vmatpush1.bf16.msra.mxu0 0
      %506 = vmatprep.subr.bf16.mxu0 0
      %507 = vmatpush1.bf16.msra.mxu0 0
      %508 = vmatprep.subr.bf16.mxu0 0
      %509 = vmatpush1.bf16.msra.mxu0 0
      %510 = vmatprep.subr.bf16.mxu0 0
      %511 = vmatpush1.bf16.msra.mxu0 0
      %512 = vmatprep.subr.bf16.mxu0 0
      %513 = vmatpush1.bf16.msra.mxu0 0
      %514 = vmatprep.subr.bf16.mxu0 0
      %515 = vmatpush1.bf16.msra.mxu0 0
      %516 = vmatprep.subr.bf16.mxu0 0
      %517 = vmatpush1.bf16.msra.mxu0 0
      %518 = vmatprep.subr.bf16.mxu0 0
      %519 = vmatpush1.bf16.msra.mxu0 0
      %520 = vmatprep.subr.bf16.mxu0 0
      %521 = vmatpush1.bf16.msra.mxu0 0
      %522 = vmatprep.subr.bf16.mxu0 0
      %523 = vmatpush1.bf16.msra.mxu0 0
      %524 = vmatprep.subr.bf16.mxu0 0
      %525 = vmatpush1.bf16.msra.mxu0 0
      %526 = vmatprep.subr.bf16.mxu0 0
      %527 = vmatpush1.bf16.msra.mxu0 0
      %528 = vmatprep.subr.bf16.mxu0 0
      %529 = vmatpush1.bf16.msra.mxu0 0
      %530 = vmatprep.mubr.bf16.mxu0 0
      %531 = vmatmul.mubr.bf16.gmra.mrb[0].mxu0 %v496
      %v532 = vpop.f32.mrb[0].mxu0
      %v533 = vadd.f32 %v492, %v532
      %v534 = vpop.f32.mrb[0].mxu0
      %v535 = vpop.f32.mrb[0].mxu0
      %v536 = vpop.f32.mrb[0].mxu0
      %537 = vdwg.mxu0
      %539 = vrot.lane.b32.xlu0 %v533, 96
      %v540 = vpop.permute.xlu0 %539
      %542 = vxpose.xlu0.b32.start [1/16] %v540, 128
      %543 = vxpose.xlu0.b32.cont [2/16] 0.0, 128
      %544 = vxpose.xlu0.b32.cont [3/16] 0.0, 128
      %545 = vxpose.xlu0.b32.cont [4/16] 0.0, 128
      %546 = vxpose.xlu0.b32.cont [5/16] 0.0, 128
      %547 = vxpose.xlu0.b32.cont [6/16] 0.0, 128
      %548 = vxpose.xlu0.b32.cont [7/16] 0.0, 128
      %549 = vxpose.xlu0.b32.cont [8/16] 0.0, 128
      %550 = vxpose.xlu0.b32.cont [9/16] 0.0, 128
      %551 = vxpose.xlu0.b32.cont [10/16] 0.0, 128
      %552 = vxpose.xlu0.b32.cont [11/16] 0.0, 128
      %553 = vxpose.xlu0.b32.cont [12/16] 0.0, 128
      %554 = vxpose.xlu0.b32.cont [13/16] 0.0, 128
      %555 = vxpose.xlu0.b32.cont [14/16] 0.0, 128
      %556 = vxpose.xlu0.b32.cont [15/16] 0.0, 128
      %557 = vxpose.xlu0.b32.end [16/16] 0.0, 128
      %v558 = vpop.trf.xlu0
      %v559 = vpop.trf.xlu0
      %v560 = vpop.trf.xlu0
      %v561 = vpop.trf.xlu0
      %v562 = vpop.trf.xlu0
      %v563 = vpop.trf.xlu0
      %v564 = vpop.trf.xlu0
      %v565 = vpop.trf.xlu0
      %v566 = vpop.trf.xlu0
      %v567 = vpop.trf.xlu0
      %v568 = vpop.trf.xlu0
      %v569 = vpop.trf.xlu0
      %v570 = vpop.trf.xlu0
      %v571 = vpop.trf.xlu0
      %v572 = vpop.trf.xlu0
      %v573 = vpop.trf.xlu0
      %v574 = vpack.c.bf16 %v533, %v533
      %v575 = vpack.c.bf16 %v559, %v558
      %vm576 = vcmask 130048
      %v578 = vsel %vm576, %v574, 0
      %580 = vmatprep.subr.bf16.mxu0 0
      %581 = vmatpush1.bf16.msra.mxu0 %v575
      %582 = vmatprep.subr.bf16.mxu0 0
      %583 = vmatpush1.bf16.msra.mxu0 0
      %584 = vmatprep.subr.bf16.mxu0 0
      %585 = vmatpush1.bf16.msra.mxu0 0
      %586 = vmatprep.subr.bf16.mxu0 0
      %587 = vmatpush1.bf16.msra.mxu0 0
      %588 = vmatprep.subr.bf16.mxu0 0
      %589 = vmatpush1.bf16.msra.mxu0 0
      %590 = vmatprep.subr.bf16.mxu0 0
      %591 = vmatpush1.bf16.msra.mxu0 0
      %592 = vmatprep.subr.bf16.mxu0 0
      %593 = vmatpush1.bf16.msra.mxu0 0
      %594 = vmatprep.subr.bf16.mxu0 0
      %595 = vmatpush1.bf16.msra.mxu0 0
      %596 = vmatprep.subr.bf16.mxu0 0
      %597 = vmatpush1.bf16.msra.mxu0 0
      %598 = vmatprep.subr.bf16.mxu0 0
      %599 = vmatpush1.bf16.msra.mxu0 0
      %600 = vmatprep.subr.bf16.mxu0 0
      %601 = vmatpush1.bf16.msra.mxu0 0
      %602 = vmatprep.subr.bf16.mxu0 0
      %603 = vmatpush1.bf16.msra.mxu0 0
      %604 = vmatprep.subr.bf16.mxu0 0
      %605 = vmatpush1.bf16.msra.mxu0 0
      %606 = vmatprep.subr.bf16.mxu0 0
      %607 = vmatpush1.bf16.msra.mxu0 0
      %608 = vmatprep.subr.bf16.mxu0 0
      %609 = vmatpush1.bf16.msra.mxu0 0
      %610 = vmatprep.subr.bf16.mxu0 0
      %611 = vmatpush1.bf16.msra.mxu0 0
      %612 = vmatprep.mubr.bf16.mxu0 0
      %613 = vmatmul.mubr.bf16.gmra.mrb[0].mxu0 %v578
      %v614 = vpop.f32.mrb[0].mxu0
      %v615 = vadd.f32 0.0, %v614
      %v616 = vpop.f32.mrb[0].mxu0
      %v617 = vpop.f32.mrb[0].mxu0
      %v618 = vpop.f32.mrb[0].mxu0
      %619 = vdwg.mxu0
      %v620 = vmul.f32 %v615, 0.25
      %v622 = vlaneseq
      %v623 = vshrl.u32 %v622, 7
      %v624 = vsub.s32 0, %v623
      %v625 = vrot.slane %v479, %v624
      %v627 = vadd.f32 %v620, %v625
      %vm628 = vcmask 64512
      %v629 = vsel %vm628, %v627, -inf
      %630 = vmax.xlane.f32.xlu0 %v629
      %v631 = vpop.xlane.xlu0 %630
      %v632 = vsub.f32 %v627, %v631
      %v633 = vmul.f32 %v632, 1.442695
      %v634 = vpow.pop %v633
      %v635 = vsel %vm628, %v634, 0.0
      %636 = vadd.xlane.f32.xlu0 %v635
      %v637 = vpop.xlane.xlu0 %636
      %v638 = vrcp.pop %v637
      %v639 = vmul.f32 %v634, %v638
      %v640 = vpack.c.bf16 %v639, %v639
      %642 = vrot.lane.b32.xlu0 %v574, 64
      %v643 = vpop.permute.xlu0 %642
      %v645 = vsel %vm628, %v640, 0
      %vm647 = vcmask 1043456
      %v649 = vsel %vm647, %v643, 0
      %651 = vmatprep.subr.bf16.mxu0 0
      %652 = vmatpush1.bf16.msra.mxu0 %v649
      %653 = vmatprep.subr.bf16.mxu0 0
      %654 = vmatpush1.bf16.msra.mxu0 0
      %655 = vmatprep.subr.bf16.mxu0 0
      %656 = vmatpush1.bf16.msra.mxu0 0
      %657 = vmatprep.subr.bf16.mxu0 0
      %658 = vmatpush1.bf16.msra.mxu0 0
      %659 = vmatprep.subr.bf16.mxu0 0
      %660 = vmatpush1.bf16.msra.mxu0 0
      %661 = vmatprep.subr.bf16.mxu0 0
      %662 = vmatpush1.bf16.msra.mxu0 0
      %663 = vmatprep.subr.bf16.mxu0 0
      %664 = vmatpush1.bf16.msra.mxu0 0
      %665 = vmatprep.subr.bf16.mxu0 0
      %666 = vmatpush1.bf16.msra.mxu0 0
      %667 = vmatprep.subr.bf16.mxu0 0
      %668 = vmatpush1.bf16.msra.mxu0 0
      %669 = vmatprep.subr.bf16.mxu0 0
      %670 = vmatpush1.bf16.msra.mxu0 0
      %671 = vmatprep.subr.bf16.mxu0 0
      %672 = vmatpush1.bf16.msra.mxu0 0
      %673 = vmatprep.subr.bf16.mxu0 0
      %674 = vmatpush1.bf16.msra.mxu0 0
      %675 = vmatprep.subr.bf16.mxu0 0
      %676 = vmatpush1.bf16.msra.mxu0 0
      %677 = vmatprep.subr.bf16.mxu0 0
      %678 = vmatpush1.bf16.msra.mxu0 0
      %679 = vmatprep.subr.bf16.mxu0 0
      %680 = vmatpush1.bf16.msra.mxu0 0
      %681 = vmatprep.subr.bf16.mxu0 0
      %682 = vmatpush1.bf16.msra.mxu0 0
      %683 = vmatprep.mubr.bf16.mxu0 0
      %684 = vmatmul.mubr.bf16.gmra.mrb[0].mxu0 %v645
      %v685 = vpop.f32.mrb[0].mxu0
      %v686 = vadd.f32 0.0, %v685
      %v687 = vpop.f32.mrb[0].mxu0
      %v688 = vpop.f32.mrb[0].mxu0
      %v689 = vpop.f32.mrb[0].mxu0
      %690 = vdwg.mxu0
      %691 = vrot.lane.b32.xlu0 %v533, 80
      %v692 = vpop.permute.xlu0 %691
      %694 = vxpose.xlu0.b32.start [1/16] %v692, 128
      %695 = vxpose.xlu0.b32.cont [2/16] 0.0, 128
      %696 = vxpose.xlu0.b32.cont [3/16] 0.0, 128
      %697 = vxpose.xlu0.b32.cont [4/16] 0.0, 128
      %698 = vxpose.xlu0.b32.cont [5/16] 0.0, 128
      %699 = vxpose.xlu0.b32.cont [6/16] 0.0, 128
      %700 = vxpose.xlu0.b32.cont [7/16] 0.0, 128
      %701 = vxpose.xlu0.b32.cont [8/16] 0.0, 128
      %702 = vxpose.xlu0.b32.cont [9/16] 0.0, 128
      %703 = vxpose.xlu0.b32.cont [10/16] 0.0, 128
      %704 = vxpose.xlu0.b32.cont [11/16] 0.0, 128
      %705 = vxpose.xlu0.b32.cont [12/16] 0.0, 128
      %706 = vxpose.xlu0.b32.cont [13/16] 0.0, 128
      %707 = vxpose.xlu0.b32.cont [14/16] 0.0, 128
      %708 = vxpose.xlu0.b32.cont [15/16] 0.0, 128
      %709 = vxpose.xlu0.b32.end [16/16] 0.0, 128
      %v710 = vpop.trf.xlu0
      %v711 = vpop.trf.xlu0
      %v712 = vpop.trf.xlu0
      %v713 = vpop.trf.xlu0
      %v714 = vpop.trf.xlu0
      %v715 = vpop.trf.xlu0
      %v716 = vpop.trf.xlu0
      %v717 = vpop.trf.xlu0
      %v718 = vpop.trf.xlu0
      %v719 = vpop.trf.xlu0
      %v720 = vpop.trf.xlu0
      %v721 = vpop.trf.xlu0
      %v722 = vpop.trf.xlu0
      %v723 = vpop.trf.xlu0
      %v724 = vpop.trf.xlu0
      %v725 = vpop.trf.xlu0
      %v726 = vpack.c.bf16 %v711, %v710
      %727 = vrot.lane.b32.xlu0 %v574, 112
      %v728 = vpop.permute.xlu0 %727
      %v730 = vsel %vm576, %v728, 0
      %732 = vmatprep.subr.bf16.mxu0 0
      %733 = vmatpush1.bf16.msra.mxu0 %v726
      %734 = vmatprep.subr.bf16.mxu0 0
      %735 = vmatpush1.bf16.msra.mxu0 0
      %736 = vmatprep.subr.bf16.mxu0 0
      %737 = vmatpush1.bf16.msra.mxu0 0
      %738 = vmatprep.subr.bf16.mxu0 0
      %739 = vmatpush1.bf16.msra.mxu0 0
      %740 = vmatprep.subr.bf16.mxu0 0
      %741 = vmatpush1.bf16.msra.mxu0 0
      %742 = vmatprep.subr.bf16.mxu0 0
      %743 = vmatpush1.bf16.msra.mxu0 0
      %744 = vmatprep.subr.bf16.mxu0 0
      %745 = vmatpush1.bf16.msra.mxu0 0
      %746 = vmatprep.subr.bf16.mxu0 0
      %747 = vmatpush1.bf16.msra.mxu0 0
      %748 = vmatprep.subr.bf16.mxu0 0
      %749 = vmatpush1.bf16.msra.mxu0 0
      %750 = vmatprep.subr.bf16.mxu0 0
      %751 = vmatpush1.bf16.msra.mxu0 0
      %752 = vmatprep.subr.bf16.mxu0 0
      %753 = vmatpush1.bf16.msra.mxu0 0
      %754 = vmatprep.subr.bf16.mxu0 0
      %755 = vmatpush1.bf16.msra.mxu0 0
      %756 = vmatprep.subr.bf16.mxu0 0
      %757 = vmatpush1.bf16.msra.mxu0 0
      %758 = vmatprep.subr.bf16.mxu0 0
      %759 = vmatpush1.bf16.msra.mxu0 0
      %760 = vmatprep.subr.bf16.mxu0 0
      %761 = vmatpush1.bf16.msra.mxu0 0
      %762 = vmatprep.subr.bf16.mxu0 0
      %763 = vmatpush1.bf16.msra.mxu0 0
      %764 = vmatprep.mubr.bf16.mxu0 0
      %765 = vmatmul.mubr.bf16.gmra.mrb[0].mxu0 %v730
      %v766 = vpop.f32.mrb[0].mxu0
      %v767 = vadd.f32 0.0, %v766
      %v768 = vpop.f32.mrb[0].mxu0
      %v769 = vpop.f32.mrb[0].mxu0
      %v770 = vpop.f32.mrb[0].mxu0
      %771 = vdwg.mxu0
      %v772 = vmul.f32 %v767, 0.25
      %v773 = vadd.f32 %v772, %v625
      %v774 = vsel %vm628, %v773, -inf
      %775 = vmax.xlane.f32.xlu0 %v774
      %v776 = vpop.xlane.xlu0 %775
      %v777 = vsub.f32 %v773, %v776
      %v778 = vmul.f32 %v777, 1.442695
      %v779 = vpow.pop %v778
      %v780 = vsel %vm628, %v779, 0.0
      %781 = vadd.xlane.f32.xlu0 %v780
      %v782 = vpop.xlane.xlu0 %781
      %v783 = vrcp.pop %v782
      %v784 = vmul.f32 %v779, %v783
      %v785 = vpack.c.bf16 %v784, %v784
      %786 = vrot.lane.b32.xlu0 %v574, 48
      %v787 = vpop.permute.xlu0 %786
      %v789 = vsel %vm628, %v785, 0
      %v792 = vsel %vm647, %v787, 0
      %794 = vmatprep.subr.bf16.mxu0 0
      %795 = vmatpush1.bf16.msra.mxu0 %v792
      %796 = vmatprep.subr.bf16.mxu0 0
      %797 = vmatpush1.bf16.msra.mxu0 0
      %798 = vmatprep.subr.bf16.mxu0 0
      %799 = vmatpush1.bf16.msra.mxu0 0
      %800 = vmatprep.subr.bf16.mxu0 0
      %801 = vmatpush1.bf16.msra.mxu0 0
      %802 = vmatprep.subr.bf16.mxu0 0
      %803 = vmatpush1.bf16.msra.mxu0 0
      %804 = vmatprep.subr.bf16.mxu0 0
      %805 = vmatpush1.bf16.msra.mxu0 0
      %806 = vmatprep.subr.bf16.mxu0 0
      %807 = vmatpush1.bf16.msra.mxu0 0
      %808 = vmatprep.subr.bf16.mxu0 0
      %809 = vmatpush1.bf16.msra.mxu0 0
      %810 = vmatprep.subr.bf16.mxu0 0
      %811 = vmatpush1.bf16.msra.mxu0 0
      %812 = vmatprep.subr.bf16.mxu0 0
      %813 = vmatpush1.bf16.msra.mxu0 0
      %814 = vmatprep.subr.bf16.mxu0 0
      %815 = vmatpush1.bf16.msra.mxu0 0
      %816 = vmatprep.subr.bf16.mxu0 0
      %817 = vmatpush1.bf16.msra.mxu0 0
      %818 = vmatprep.subr.bf16.mxu0 0
      %819 = vmatpush1.bf16.msra.mxu0 0
      %820 = vmatprep.subr.bf16.mxu0 0
      %821 = vmatpush1.bf16.msra.mxu0 0
      %822 = vmatprep.subr.bf16.mxu0 0
      %823 = vmatpush1.bf16.msra.mxu0 0
      %824 = vmatprep.subr.bf16.mxu0 0
      %825 = vmatpush1.bf16.msra.mxu0 0
      %826 = vmatprep.mubr.bf16.mxu0 0
      %827 = vmatmul.mubr.bf16.gmra.mrb[0].mxu0 %v789
      %v828 = vpop.f32.mrb[0].mxu0
      %v829 = vadd.f32 0.0, %v828
      %v830 = vpop.f32.mrb[0].mxu0
      %v831 = vpop.f32.mrb[0].mxu0
      %v832 = vpop.f32.mrb[0].mxu0
      %833 = vdwg.mxu0
      %835 = vrot.lane.b32.xlu0 %v829, 16
      %v836 = vpop.permute.xlu0 %835
      %v838 = vsel %vm576, %v686, %v836
      %v839 = vld [vmem:[%s4] sm:$0xff]
      %v840 = vld [vmem:[%s4 + $0x8] sm:$0xff]
      %v841 = vld [vmem:[%s4 + $0x10] sm:$0xff]
      %v842 = vld [vmem:[%s4 + $0x18] sm:$0xff]
      %v843 = vpack.c.bf16 %v838, %v838
      %v844 = vpack.c.bf16 %v840, %v839
      %v845 = vpack.c.bf16 %v842, %v841
      %v846 = vld [vmem:[%s5] sm:$0x1]
      %v848 = vlaneseq
      %v849 = vshrl.u32 %v848, 7
      %v850 = vsub.s32 0, %v849
      %v851 = vrot.slane %v846, %v850
      %v854 = vsel %vm494, %v843, 0
      %856 = vmatprep.subr.bf16.mxu0 0
      %857 = vmatpush1.bf16.msra.mxu0 %v844
      %858 = vmatprep.subr.bf16.mxu0 0
      %859 = vmatpush1.bf16.msra.mxu0 %v845
      %860 = vmatprep.subr.bf16.mxu0 0
      %861 = vmatpush1.bf16.msra.mxu0 0
      %862 = vmatprep.subr.bf16.mxu0 0
      %863 = vmatpush1.bf16.msra.mxu0 0
      %864 = vmatprep.subr.bf16.mxu0 0
      %865 = vmatpush1.bf16.msra.mxu0 0
      %866 = vmatprep.subr.bf16.mxu0 0
      %867 = vmatpush1.bf16.msra.mxu0 0
      %868 = vmatprep.subr.bf16.mxu0 0
      %869 = vmatpush1.bf16.msra.mxu0 0
      %870 = vmatprep.subr.bf16.mxu0 0
      %871 = vmatpush1.bf16.msra.mxu0 0
      %872 = vmatprep.subr.bf16.mxu0 0
      %873 = vmatpush1.bf16.msra.mxu0 0
      %874 = vmatprep.subr.bf16.mxu0 0
      %875 = vmatpush1.bf16.msra.mxu0 0
      %876 = vmatprep.subr.bf16.mxu0 0
      %877 = vmatpush1.bf16.msra.mxu0 0
      %878 = vmatprep.subr.bf16.mxu0 0
      %879 = vmatpush1.bf16.msra.mxu0 0
      %880 = vmatprep.subr.bf16.mxu0 0
      %881 = vmatpush1.bf16.msra.mxu0 0
      %882 = vmatprep.subr.bf16.mxu0 0
      %883 = vmatpush1.bf16.msra.mxu0 0
      %884 = vmatprep.subr.bf16.mxu0 0
      %885 = vmatpush1.bf16.msra.mxu0 0
      %886 = vmatprep.subr.bf16.mxu0 0
      %887 = vmatpush1.bf16.msra.mxu0 0
      %888 = vmatprep.mubr.bf16.mxu0 0
      %889 = vmatmul.mubr.bf16.gmra.mrb[0].mxu0 %v854
      %v890 = vpop.f32.mrb[0].mxu0
      %v891 = vadd.f32 %v851, %v890
      %v892 = vpop.f32.mrb[0].mxu0
      %v893 = vpop.f32.mrb[0].mxu0
      %v894 = vpop.f32.mrb[0].mxu0
      %895 = vdwg.mxu0
      %v896 = vadd.f32 %v891, %v478
      %v897 = vld [vmem:[%s6] sm:$0x1]
      %v898 = vld [vmem:[%s7] sm:$0x1]
      %v899 = vsel %vm494, %v896, 0.0
      %900 = vadd.xlane.f32.xlu0 %v899
      %v901 = vpop.xlane.xlu0 %900
      %v902 = vrcp.pop 32.0
      %v903 = vmul.f32 %v901, %v902
      %v904 = vsub.f32 %v896, %v903
      %v905 = vmul.f32 %v904, %v904
      %v906 = vsel %vm494, %v905, 0.0
      %907 = vadd.xlane.f32.xlu0 %v906
      %v908 = vpop.xlane.xlu0 %907
      %v909 = vmul.f32 %v908, %v902
      %v910 = vadd.f32 %v909, 1e-12
      %v911 = vrsqrt.pop %v910
      %v912 = vmul.f32 %v904, %v911
      %v914 = vlaneseq
      %v915 = vshrl.u32 %v914, 7
      %v916 = vsub.s32 0, %v915
      %v917 = vrot.slane %v897, %v916
      %v919 = vmul.f32 %v912, %v917
      %v921 = vlaneseq
      %v922 = vshrl.u32 %v921, 7
      %v923 = vsub.s32 0, %v922
      %v924 = vrot.slane %v898, %v923
      %v926 = vadd.f32 %v919, %v924
      %v927 = vld [vmem:[%s8] sm:$0xff]
      %v928 = vld [vmem:[%s8 + $0x8] sm:$0xff]
      %v929 = vld [vmem:[%s8 + $0x10] sm:$0xff]
      %v930 = vld [vmem:[%s8 + $0x18] sm:$0xff]
      %v931 = vpack.c.bf16 %v926, %v926
      %v932 = vpack.c.bf16 %v928, %v927
      %v933 = vpack.c.bf16 %v930, %v929
      %v934 = vld [vmem:[%s9] sm:$0x1]
      %v936 = vlaneseq
      %v937 = vshrl.u32 %v936, 7
      %v938 = vsub.s32 0, %v937
      %v939 = vrot.slane %v934, %v938
      %v942 = vsel %vm494, %v931, 0
      %944 = vmatprep.subr.bf16.mxu0 0
      %945 = vmatpush1.bf16.msra.mxu0 %v932
      %946 = vmatprep.subr.bf16.mxu0 0
      %947 = vmatpush1.bf16.msra.mxu0 %v933
      %948 = vmatprep.subr.bf16.mxu0 0
      %949 = vmatpush1.bf16.msra.mxu0 0
      %950 = vmatprep.subr.bf16.mxu0 0
      %951 = vmatpush1.bf16.msra.mxu0 0
      %952 = vmatprep.subr.bf16.mxu0 0
      %953 = vmatpush1.bf16.msra.mxu0 0
      %954 = vmatprep.subr.bf16.mxu0 0
      %955 = vmatpush1.bf16.msra.mxu0 0
      %956 = vmatprep.subr.bf16.mxu0 0
      %957 = vmatpush1.bf16.msra.mxu0 0
      %958 = vmatprep.subr.bf16.mxu0 0
      %959 = vmatpush1.bf16.msra.mxu0 0
      %960 = vmatprep.subr.bf16.mxu0 0
      %961 = vmatpush1.bf16.msra.mxu0 0
      %962 = vmatprep.subr.bf16.mxu0 0
      %963 = vmatpush1.bf16.msra.mxu0 0
      %964 = vmatprep.subr.bf16.mxu0 0
      %965 = vmatpush1.bf16.msra.mxu0 0
      %966 = vmatprep.subr.bf16.mxu0 0
      %967 = vmatpush1.bf16.msra.mxu0 0
      %968 = vmatprep.subr.bf16.mxu0 0
      %969 = vmatpush1.bf16.msra.mxu0 0
      %970 = vmatprep.subr.bf16.mxu0 0
      %971 = vmatpush1.bf16.msra.mxu0 0
      %972 = vmatprep.subr.bf16.mxu0 0
      %973 = vmatpush1.bf16.msra.mxu0 0
      %974 = vmatprep.subr.bf16.mxu0 0
      %975 = vmatpush1.bf16.msra.mxu0 0
      %976 = vmatprep.mubr.bf16.mxu0 0
      %977 = vmatmul.mubr.bf16.gmra.mrb[0].mxu0 %v942
      %v978 = vpop.f32.mrb[0].mxu0
      %v979 = vadd.f32 %v939, %v978
      %v980 = vpop.f32.mrb[0].mxu0
      %v981 = vpop.f32.mrb[0].mxu0
      %v982 = vpop.f32.mrb[0].mxu0
      %983 = vdwg.mxu0
      %v984 = vmul.f32 %v979, 0.5
      %v985 = vmul.f32 %v979, 0.044715
      %v986 = vmul.f32 %v985, %v979
      %v987 = vmul.f32 %v986, %v979
      %v988 = vadd.f32 %v979, %v987
      %v989 = vmul.f32 %v988, 0.7978846
      %v990 = vtanh.pop %v989
      %v991 = vadd.f32 %v990, 1.0
      %v992 = vmul.f32 %v984, %v991
      %v993 = vld [vmem:[%s10] sm:$0xff]
      %v994 = vld [vmem:[%s10 + $0x8] sm:$0xff]
      %v995 = vld [vmem:[%s10 + $0x10] sm:$0xff]
      %v996 = vld [vmem:[%s10 + $0x18] sm:$0xff]
      %v997 = vld [vmem:[%s10 + $0x20] sm:$0xff]
      %v998 = vld [vmem:[%s10 + $0x28] sm:$0xff]
      %v999 = vld [vmem:[%s10 + $0x30] sm:$0xff]
      %v1000 = vld [vmem:[%s10 + $0x38] sm:$0xff]
      %v1001 = vpack.c.bf16 %v992, %v992
      %v1002 = vpack.c.bf16 %v994, %v993
      %v1003 = vpack.c.bf16 %v996, %v995
      %v1004 = vpack.c.bf16 %v998, %v997
      %v1005 = vpack.c.bf16 %v1000, %v999
      %v1006 = vld [vmem:[%s11] sm:$0x1]
      %v1008 = vlaneseq
      %v1009 = vshrl.u32 %v1008, 7
      %v1010 = vsub.s32 0, %v1009
      %v1011 = vrot.slane %v1006, %v1010
      %vm1013 = vcmask 523264
      %v1015 = vsel %vm1013, %v1001, 0
      %1017 = vmatprep.subr.bf16.mxu0 0
      %1018 = vmatpush1.bf16.msra.mxu0 %v1002
      %1019 = vmatprep.subr.bf16.mxu0 0
      %1020 = vmatpush1.bf16.msra.mxu0 %v1003
      %1021 = vmatprep.subr.bf16.mxu0 0
      %1022 = vmatpush1.bf16.msra.mxu0 %v1004
      %1023 = vmatprep.subr.bf16.mxu0 0
      %1024 = vmatpush1.bf16.msra.mxu0 %v1005
      %1025 = vmatprep.subr.bf16.mxu0 0
      %1026 = vmatpush1.bf16.msra.mxu0 0
      %1027 = vmatprep.subr.bf16.mxu0 0
      %1028 = vmatpush1.bf16.msra.mxu0 0
      %1029 = vmatprep.subr.bf16.mxu0 0
      %1030 = vmatpush1.bf16.msra.mxu0 0
      %1031 = vmatprep.subr.bf16.mxu0 0
      %1032 = vmatpush1.bf16.msra.mxu0 0
      %1033 = vmatprep.subr.bf16.mxu0 0
      %1034 = vmatpush1.bf16.msra.mxu0 0
      %1035 = vmatprep.subr.bf16.mxu0 0
      %1036 = vmatpush1.bf16.msra.mxu0 0
      %1037 = vmatprep.subr.bf16.mxu0 0
      %1038 = vmatpush1.bf16.msra.mxu0 0
      %1039 = vmatprep.subr.bf16.mxu0 0
      %1040 = vmatpush1.bf16.msra.mxu0 0
      %1041 = vmatprep.subr.bf16.mxu0 0
      %1042 = vmatpush1.bf16.msra.mxu0 0
      %1043 = vmatprep.subr.bf16.mxu0 0
      %1044 = vmatpush1.bf16.msra.mxu0 0
      %1045 = vmatprep.subr.bf16.mxu0 0
      %1046 = vmatpush1.bf16.msra.mxu0 0
      %1047 = vmatprep.subr.bf16.mxu0 0
      %1048 = vmatpush1.bf16.msra.mxu0 0
      %1049 = vmatprep.mubr.bf16.mxu0 0
      %1050 = vmatmul.mubr.bf16.gmra.mrb[0].mxu0 %v1015
      %v1051 = vpop.f32.mrb[0].mxu0
      %v1052 = vadd.f32 %v1011, %v1051
      %v1053 = vpop.f32.mrb[0].mxu0
      %v1054 = vpop.f32.mrb[0].mxu0
      %v1055 = vpop.f32.mrb[0].mxu0
      %1056 = vdwg.mxu0
      %v1057 = vadd.f32 %v1052, %v926
      %v1058 = vld [vmem:[%s12] sm:$0x1]
      %v1059 = vld [vmem:[%s13] sm:$0x1]
      %v1060 = vsel %vm494, %v1057, 0.0
      %1061 = vadd.xlane.f32.xlu0 %v1060
      %v1062 = vpop.xlane.xlu0 %1061
      %v1063 = vmul.f32 %v1062, %v902
      %v1064 = vsub.f32 %v1057, %v1063
      %v1065 = vmul.f32 %v1064, %v1064
      %v1066 = vsel %vm494, %v1065, 0.0
      %1067 = vadd.xlane.f32.xlu0 %v1066
      %v1068 = vpop.xlane.xlu0 %1067
      %v1069 = vmul.f32 %v1068, %v902
      %v1070 = vadd.f32 %v1069, 1e-12
      %v1071 = vrsqrt.pop %v1070
      %v1072 = vmul.f32 %v1064, %v1071
      %v1074 = vlaneseq
      %v1075 = vshrl.u32 %v1074, 7
      %v1076 = vsub.s32 0, %v1075
      %v1077 = vrot.slane %v1058, %v1076
      %v1079 = vmul.f32 %v1072, %v1077
      %v1081 = vlaneseq
      %v1082 = vshrl.u32 %v1081, 7
      %v1083 = vsub.s32 0, %v1082
      %v1084 = vrot.slane %v1059, %v1083
      %v1086 = vadd.f32 %v1079, %v1084
      %1087 = vst.msk [vmem:[%s476] sm:$0xff] %vm494, %v1086
      %p1088 = scmp.lt.s32.totalorder %s25, 1
      %s1089 = scalar_select %p1088, %s25, 1
      %s1090 = smul.addr %s1089, 8
      %s1091 = scalar_lea.vmem %s14, %s1090
      // Predicated region
      $region77: #{plm_victim_forward.5} parent=75 // pred_check
        %p1092 = pneg %p347
      $region78: #{plm_victim_forward.5} parent=75 // pred_check_branch
        %1094 = sbr.rel (%p1092) target = $region80
      $region79: #{plm_victim_forward.5} parent=75 // pred_region
        _
      $region80: #{plm_victim_forward.5} parent=75 // pred_fallthru
        _
    $region76: #{plm_victim_forward.5} parent=5 // pred_fallthru
      _
    %p1095 = scmp.le.s32.totalorder 2, %s20
    // Predicated region
    $region81: #{plm_victim_forward.5} parent=5 // pred_check
      %p1096 = pneg %p1095
    $region82: #{plm_victim_forward.5} parent=5 // pred_check_branch
      %1098 = sbr.rel (%p1096) target = $region84
    $region83: #{plm_victim_forward.5} parent=5 // pred_region
      %s1099 = ssub.s32 %s20, 2
      // Predicated region
      $region85: #{plm_victim_forward.5} parent=83 // pred_check
        %p1100 = pneg %p353
      $region86: #{plm_victim_forward.5} parent=83 // pred_check_branch
        %1102 = sbr.rel (%p1100) target = $region88
      $region87: #{plm_victim_forward.5} parent=83 // pred_region
        %p1103 = scmp.lt.s32.totalorder %s26, 1
        %s1104 = scalar_select %p1103, %s26, 1
        %s1105 = smul.addr %s1104, 8
        %s1106 = scalar_lea.vmem %s14, %s1105
      $region88: #{plm_victim_forward.5} parent=83 // pred_fallthru
        _
    $region84: #{plm_victim_forward.5} parent=5 // pred_fallthru
      _
  $region6: #{plm_victim_forward.5} parent=0 // loop_footer
    %s24 = sadd.s32 1, %s20
  $region7: #{plm_victim_forward.5} parent=0 // loop_footer_branch
    %19 = sbr.rel target = $region3
  $region8: #{plm_victim_forward.5} parent=0 // loop_exit
    _

</llo_original>
